<compile_context>
chip_gen: v6e
topology: v6e:2x2x1
jax: 0.10.0
libtpu: 0.0.40
codegen_flags: <defaults>
</compile_context>

<pallas_src>
from functools import partial

import jax
import jax.numpy as jnp
from jax import lax
from jax.experimental import pallas as pl
from jax.experimental.pallas import tpu as pltpu


def attn_stack_kernel(x_ref, gamma_ref, beta_ref, wqkv_ref, wproj_ref, bproj_ref,
                      o_ref, *, heads, scale, eps):
    d = pl.program_id(1)

    # First depth step: load the residual stream into the depth-resident output block.
    @pl.when(d == 0)
    def _():
        o_ref[...] = x_ref[...]

    x = o_ref[0]                                   # (N, C) f32 residual stream
    N, C = x.shape
    hd = C // heads

    # --- LayerNorm (f32, biased variance, eps=1e-5, affine) ---
    mean = jnp.mean(x, axis=-1, keepdims=True)
    xc = x - mean
    var = jnp.mean(xc * xc, axis=-1, keepdims=True)
    xn = xc * lax.rsqrt(var + eps)
    xn = xn * gamma_ref[0] + beta_ref[0]

    # --- QKV projection: one full-width bf16 matmul, f32 accumulate ---
    qkv = jnp.dot(xn.astype(jnp.bfloat16), wqkv_ref[0],
                  preferred_element_type=jnp.float32)         # (N, 3C) f32

    # fold the attention scale into q once (touches N*C, not per-head N*N)
    q_all = (qkv[:, :C] * scale).astype(jnp.bfloat16)
    k_all = qkv[:, C:2 * C].astype(jnp.bfloat16)
    v_all = qkv[:, 2 * C:].astype(jnp.bfloat16)
    wproj = wproj_ref[0]                                      # (C, C) bf16

    # --- per-head attention, accumulated directly into the output projection ---
    # (no lane-dim concatenate; each head's intermediates are consumed immediately)
    acc = jnp.zeros((N, C), jnp.float32)
    for h in range(heads):
        sl = slice(h * hd, (h + 1) * hd)
        q, k, v = q_all[:, sl], k_all[:, sl], v_all[:, sl]
        # s = q @ k^T via dot_general dimension numbers (no explicit transpose)
        s = lax.dot_general(q, k, (((1,), (1,)), ((), ())),
                            preferred_element_type=jnp.float32)   # (N, N) f32
        s = s - jnp.max(s, axis=-1, keepdims=True)
        p = jnp.exp(s)
        p = p * pl.reciprocal(jnp.sum(p, axis=-1, keepdims=True), approx=True)
        o_h = jnp.dot(p.astype(jnp.bfloat16), v,
                      preferred_element_type=jnp.float32)         # (N, hd)
        acc = acc + jnp.dot(o_h.astype(jnp.bfloat16), wproj[sl, :],
                            preferred_element_type=jnp.float32)   # (N, C)

    # --- bias + residual; stays resident in VMEM for the next depth step ---
    o_ref[0] = x + acc + bproj_ref[0]


def attn_forward(x, params, *, heads, eps=1e-5):
    """x: (B, N, C) f32; params: dict of (depth, ...)-stacked layer parameters."""
    B, N, C = x.shape
    depth = params["gamma"].shape[0]
    scale = float(C // heads) ** -0.5
    kernel = partial(attn_stack_kernel, heads=heads, scale=scale, eps=eps)
    return pl.pallas_call(
        kernel,
        out_shape=jax.ShapeDtypeStruct((B, N, C), x.dtype),
        grid=(B, depth),
        in_specs=[
            pl.BlockSpec((1, N, C), lambda b, d: (b, 0, 0)),      # x (read at d==0)
            pl.BlockSpec((1, 1, C), lambda b, d: (d, 0, 0)),      # ln gamma (f32)
            pl.BlockSpec((1, 1, C), lambda b, d: (d, 0, 0)),      # ln beta  (f32)
            pl.BlockSpec((1, C, 3 * C), lambda b, d: (d, 0, 0)),  # W_qkv    (bf16)
            pl.BlockSpec((1, C, C), lambda b, d: (d, 0, 0)),      # W_proj   (bf16)
            pl.BlockSpec((1, 1, C), lambda b, d: (d, 0, 0)),      # b_proj   (f32)
        ],
        # residual stream: same block index for all d -> resident across depth
        out_specs=pl.BlockSpec((1, N, C), lambda b, d: (b, 0, 0)),
        compiler_params=pltpu.CompilerParams(
            dimension_semantics=("parallel", "arbitrary"),
            vmem_limit_bytes=32 * 1024 * 1024,
        ),
    )(x, params["gamma"], params["beta"],
      params["wqkv"].astype(jnp.bfloat16),
      params["wproj"].astype(jnp.bfloat16),
      params["bproj"])


# ---------- pure-JAX f32 reference (correctness sanity check) ----------
def attn_forward_ref(x, params, *, heads):
    depth = params["gamma"].shape[0]
    for d in range(depth):
        B, N, C = x.shape
        hd = C // heads
        scale = hd ** -0.5
        mean = jnp.mean(x, axis=-1, keepdims=True)
        var = jnp.mean((x - mean) ** 2, axis=-1, keepdims=True)
        xn = (x - mean) / jnp.sqrt(var + 1e-5) * params["gamma"][d, 0] + params["beta"][d, 0]
        qkv = xn @ params["wqkv"][d]                              # (B, N, 3C)
        qkv = qkv.reshape(B, N, 3, heads, hd).transpose(2, 0, 3, 1, 4)
        q, k, v = qkv[0], qkv[1], qkv[2]                          # (B, H, N, hd)
        attn = jnp.einsum("bhnd,bhmd->bhnm", q, k) * scale
        attn = jax.nn.softmax(attn, axis=-1)
        o = jnp.einsum("bhnm,bhmd->bhnd", attn, v)
        o = o.transpose(0, 2, 1, 3).reshape(B, N, C)
        x = x + (o @ params["wproj"][d] + params["bproj"][d, 0])
    return x


def init_params(key, depth, dim):
    k1, k2, k3 = jax.random.split(key, 3)
    return {
        "gamma": jnp.ones((depth, 1, dim), jnp.float32),
        "beta": jnp.zeros((depth, 1, dim), jnp.float32),
        "wqkv": 0.02 * jax.random.normal(k1, (depth, dim, 3 * dim), jnp.float32),
        "wproj": 0.02 * jax.random.normal(k2, (depth, dim, dim), jnp.float32),
        "bproj": 0.01 * jax.random.normal(k3, (depth, 1, dim), jnp.float32),
    }


if __name__ == "__main__":
    # small shapes consistent with the module: B=2, seq N=8, embedding C=128, heads=8
    B, N, C, H, DEPTH = 2, 8, 128, 8, 2
    key = jax.random.PRNGKey(0)
    kx, kp = jax.random.split(key)
    x = jax.random.normal(kx, (B, N, C), jnp.float32)
    params = init_params(kp, DEPTH, C)

    out = jax.block_until_ready(attn_forward(x, params, heads=H))
    ref = attn_forward_ref(x, params, heads=H)

    assert out.shape == (B, N, C)
    max_err = float(jnp.max(jnp.abs(out - ref)))
    # bf16 MXU operands + approx reciprocal -> relax tolerance vs the f32 reference
    assert jnp.allclose(out, ref, atol=2e-2, rtol=2e-2), f"mismatch vs reference (max abs err {max_err})"

    print("KERNEL_OK")
</pallas_src>

<mosaic_0001>
module attributes {stable_mosaic.version = 11 : i64} {
  func.func @attn_stack_kernel(%arg0: i32, %arg1: i32, %arg2: memref<1x8x128xf32, #tpu.memory_space<vmem>>, %arg3: memref<1x1x128xf32, #tpu.memory_space<vmem>>, %arg4: memref<1x1x128xf32, #tpu.memory_space<vmem>>, %arg5: memref<1x128x384xbf16, #tpu.memory_space<vmem>>, %arg6: memref<1x128x128xbf16, #tpu.memory_space<vmem>>, %arg7: memref<1x1x128xf32, #tpu.memory_space<vmem>>, %arg8: memref<1x8x128xf32, #tpu.memory_space<vmem>>) attributes {dimension_semantics = [#tpu.dimension_semantics<parallel>, #tpu.dimension_semantics<arbitrary>], iteration_bounds = array<i64: 2, 2>, scalar_prefetch = 0 : i64, scratch_operands = 0 : i64, tpu.core_type = #tpu.core_type<tc>, window_params = [{transform_indices = @transform_0, window_bounds = array<i64: 1, 8, 128>}, {transform_indices = @transform_1, window_bounds = array<i64: 1, 1, 128>}, {transform_indices = @transform_2, window_bounds = array<i64: 1, 1, 128>}, {transform_indices = @transform_3, window_bounds = array<i64: 1, 128, 384>}, {transform_indices = @transform_4, window_bounds = array<i64: 1, 128, 128>}, {transform_indices = @transform_5, window_bounds = array<i64: 1, 1, 128>}, {transform_indices = @transform_6, window_bounds = array<i64: 1, 8, 128>}]} {
    %c0_i32 = arith.constant 0 : i32
    %0 = arith.cmpi eq, %arg1, %c0_i32 : i32
    %1 = arith.extui %0 : i1 to i32
    %c0_i32_0 = arith.constant 0 : i32
    %2 = arith.cmpi ne, %1, %c0_i32_0 : i32
    scf.if %2 {
      %c0_68 = arith.constant 0 : index
      %c0_69 = arith.constant 0 : index
      %c0_70 = arith.constant 0 : index
      %212 = vector.load %arg2[%c0_68, %c0_69, %c0_70] : memref<1x8x128xf32, #tpu.memory_space<vmem>>, vector<1x8x128xf32>
      %c0_71 = arith.constant 0 : index
      %c0_72 = arith.constant 0 : index
      %c0_73 = arith.constant 0 : index
      %213 = vector.load %arg8[%c0_71, %c0_72, %c0_73] : memref<1x8x128xf32, #tpu.memory_space<vmem>>, vector<1x8x128xf32>
      tpu.vector_store %arg8[%c0_71, %c0_72, %c0_73], %212 {strides = array<i32>} : memref<1x8x128xf32, #tpu.memory_space<vmem>>, vector<1x8x128xf32>,
    } else {
    }
    %c0 = arith.constant 0 : index
    %c0_1 = arith.constant 0 : index
    %c0_2 = arith.constant 0 : index
    %3 = vector.load %arg8[%c0, %c0_1, %c0_2] : memref<1x8x128xf32, #tpu.memory_space<vmem>>, vector<1x8x128xf32>
    %4 = vector.shape_cast %3 : vector<1x8x128xf32> to vector<8x128xf32>
    %cst = arith.constant dense<0.000000e+00> : vector<8xf32>
    %5 = vector.multi_reduction <add>, %4, %cst [1] : vector<8x128xf32> to vector<8xf32>
    %6 = vector.shape_cast %5 : vector<8xf32> to vector<8x1xf32>
    %cst_3 = arith.constant 1.280000e+02 : f32
    %7 = vector.broadcast %cst_3 : f32 to vector<8x1xf32>
    %8 = arith.divf %6, %7 : vector<8x1xf32>
    %9 = vector.broadcast %8 : vector<8x1xf32> to vector<8x128xf32>
    %10 = arith.subf %4, %9 : vector<8x128xf32>
    %11 = arith.mulf %10, %10 : vector<8x128xf32>
    %cst_4 = arith.constant dense<0.000000e+00> : vector<8xf32>
    %12 = vector.multi_reduction <add>, %11, %cst_4 [1] : vector<8x128xf32> to vector<8xf32>
    %13 = vector.shape_cast %12 : vector<8xf32> to vector<8x1xf32>
    %cst_5 = arith.constant 1.280000e+02 : f32
    %14 = vector.broadcast %cst_5 : f32 to vector<8x1xf32>
    %15 = arith.divf %13, %14 : vector<8x1xf32>
    %cst_6 = arith.constant 9.99999974E-6 : f32
    %16 = vector.broadcast %cst_6 : f32 to vector<8x1xf32>
    %17 = arith.addf %15, %16 : vector<8x1xf32>
    %18 = math.rsqrt %17 : vector<8x1xf32>
    %19 = vector.broadcast %18 : vector<8x1xf32> to vector<8x128xf32>
    %20 = arith.mulf %10, %19 : vector<8x128xf32>
    %c0_7 = arith.constant 0 : index
    %c0_8 = arith.constant 0 : index
    %c0_9 = arith.constant 0 : index
    %21 = vector.load %arg3[%c0_7, %c0_8, %c0_9] : memref<1x1x128xf32, #tpu.memory_space<vmem>>, vector<1x1x128xf32>
    %22 = vector.shape_cast %21 : vector<1x1x128xf32> to vector<1x128xf32>
    %23 = vector.broadcast %22 : vector<1x128xf32> to vector<8x128xf32>
    %24 = arith.mulf %20, %23 : vector<8x128xf32>
    %c0_10 = arith.constant 0 : index
    %c0_11 = arith.constant 0 : index
    %c0_12 = arith.constant 0 : index
    %25 = vector.load %arg4[%c0_10, %c0_11, %c0_12] : memref<1x1x128xf32, #tpu.memory_space<vmem>>, vector<1x1x128xf32>
    %26 = vector.shape_cast %25 : vector<1x1x128xf32> to vector<1x128xf32>
    %27 = vector.broadcast %26 : vector<1x128xf32> to vector<8x128xf32>
    %28 = arith.addf %24, %27 : vector<8x128xf32>
    %29 = arith.truncf %28 : vector<8x128xf32> to vector<8x128xbf16>
    %c0_13 = arith.constant 0 : index
    %c0_14 = arith.constant 0 : index
    %c0_15 = arith.constant 0 : index
    %30 = vector.load %arg5[%c0_13, %c0_14, %c0_15] : memref<1x128x384xbf16, #tpu.memory_space<vmem>>, vector<1x128x384xbf16>
    %31 = vector.shape_cast %30 : vector<1x128x384xbf16> to vector<128x384xbf16>
    %cst_16 = arith.constant dense<0.000000e+00> : vector<8x384xf32>
    %32 = tpu.matmul %29, %31, %cst_16 {dimension_numbers = #tpu.dot_dimension_numbers<[1], [0], [0], [1], [0, 0, 1, 1], [], []>} : vector<8x128xbf16>, vector<128x384xbf16>, vector<8x384xf32> -> vector<8x384xf32>
    %33 = vector.extract_strided_slice %32 {offsets = [0, 0], sizes = [8, 128], strides = [1, 1]} : vector<8x384xf32> to vector<8x128xf32>
    %cst_17 = arith.constant 2.500000e-01 : f32
    %34 = vector.broadcast %cst_17 : f32 to vector<8x128xf32>
    %35 = arith.mulf %33, %34 : vector<8x128xf32>
    %36 = arith.truncf %35 : vector<8x128xf32> to vector<8x128xbf16>
    %37 = vector.extract_strided_slice %32 {offsets = [0, 128], sizes = [8, 128], strides = [1, 1]} : vector<8x384xf32> to vector<8x128xf32>
    %38 = arith.truncf %37 : vector<8x128xf32> to vector<8x128xbf16>
    %39 = vector.extract_strided_slice %32 {offsets = [0, 256], sizes = [8, 128], strides = [1, 1]} : vector<8x384xf32> to vector<8x128xf32>
    %40 = arith.truncf %39 : vector<8x128xf32> to vector<8x128xbf16>
    %c0_18 = arith.constant 0 : index
    %c0_19 = arith.constant 0 : index
    %c0_20 = arith.constant 0 : index
    %41 = vector.load %arg6[%c0_18, %c0_19, %c0_20] : memref<1x128x128xbf16, #tpu.memory_space<vmem>>, vector<1x128x128xbf16>
    %42 = vector.shape_cast %41 : vector<1x128x128xbf16> to vector<128x128xbf16>
    %cst_21 = arith.constant 0.000000e+00 : f32
    %43 = vector.broadcast %cst_21 : f32 to vector<8x128xf32>
    %44 = vector.extract_strided_slice %36 {offsets = [0, 0], sizes = [8, 16], strides = [1, 1]} : vector<8x128xbf16> to vector<8x16xbf16>
    %45 = vector.extract_strided_slice %38 {offsets = [0, 0], sizes = [8, 16], strides = [1, 1]} : vector<8x128xbf16> to vector<8x16xbf16>
    %46 = vector.extract_strided_slice %40 {offsets = [0, 0], sizes = [8, 16], strides = [1, 1]} : vector<8x128xbf16> to vector<8x16xbf16>
    %cst_22 = arith.constant dense<0.000000e+00> : vector<8x8xf32>
    %47 = tpu.matmul %44, %45, %cst_22 {dimension_numbers = #tpu.dot_dimension_numbers<[1], [1], [0], [0], [0, 0, 1, 0], [], []>} : vector<8x16xbf16>, vector<8x16xbf16>, vector<8x8xf32> -> vector<8x8xf32>
    %cst_23 = arith.constant dense<0xFF800000> : vector<8xf32>
    %48 = vector.multi_reduction <maximumf>, %47, %cst_23 [1] : vector<8x8xf32> to vector<8xf32>
    %49 = vector.shape_cast %48 : vector<8xf32> to vector<8x1xf32>
    %50 = vector.broadcast %49 : vector<8x1xf32> to vector<8x8xf32>
    %51 = arith.subf %47, %50 : vector<8x8xf32>
    %52 = math.exp %51 : vector<8x8xf32>
    %cst_24 = arith.constant dense<0.000000e+00> : vector<8xf32>
    %53 = vector.multi_reduction <add>, %52, %cst_24 [1] : vector<8x8xf32> to vector<8xf32>
    %54 = vector.shape_cast %53 : vector<8xf32> to vector<8x1xf32>
    %55 = tpu.reciprocal %54 {approx = true} : vector<8x1xf32> -> vector<8x1xf32>
    %56 = vector.broadcast %55 : vector<8x1xf32> to vector<8x8xf32>
    %57 = arith.mulf %52, %56 : vector<8x8xf32>
    %58 = arith.truncf %57 : vector<8x8xf32> to vector<8x8xbf16>
    %cst_25 = arith.constant dense<0.000000e+00> : vector<8x16xf32>
    %59 = tpu.matmul %58, %46, %cst_25 {dimension_numbers = #tpu.dot_dimension_numbers<[1], [0], [0], [1], [0, 0, 1, 1], [], []>} : vector<8x8xbf16>, vector<8x16xbf16>, vector<8x16xf32> -> vector<8x16xf32>
    %60 = arith.truncf %59 : vector<8x16xf32> to vector<8x16xbf16>
    %61 = vector.extract_strided_slice %42 {offsets = [0, 0], sizes = [16, 128], strides = [1, 1]} : vector<128x128xbf16> to vector<16x128xbf16>
    %cst_26 = arith.constant dense<0.000000e+00> : vector<8x128xf32>
    %62 = tpu.matmul %60, %61, %cst_26 {dimension_numbers = #tpu.dot_dimension_numbers<[1], [0], [0], [1], [0, 0, 1, 1], [], []>} : vector<8x16xbf16>, vector<16x128xbf16>, vector<8x128xf32> -> vector<8x128xf32>
    %63 = arith.addf %43, %62 : vector<8x128xf32>
    %64 = vector.extract_strided_slice %36 {offsets = [0, 16], sizes = [8, 16], strides = [1, 1]} : vector<8x128xbf16> to vector<8x16xbf16>
    %65 = vector.extract_strided_slice %38 {offsets = [0, 16], sizes = [8, 16], strides = [1, 1]} : vector<8x128xbf16> to vector<8x16xbf16>
    %66 = vector.extract_strided_slice %40 {offsets = [0, 16], sizes = [8, 16], strides = [1, 1]} : vector<8x128xbf16> to vector<8x16xbf16>
    %cst_27 = arith.constant dense<0.000000e+00> : vector<8x8xf32>
    %67 = tpu.matmul %64, %65, %cst_27 {dimension_numbers = #tpu.dot_dimension_numbers<[1], [1], [0], [0], [0, 0, 1, 0], [], []>} : vector<8x16xbf16>, vector<8x16xbf16>, vector<8x8xf32> -> vector<8x8xf32>
    %cst_28 = arith.constant dense<0xFF800000> : vector<8xf32>
    %68 = vector.multi_reduction <maximumf>, %67, %cst_28 [1] : vector<8x8xf32> to vector<8xf32>
    %69 = vector.shape_cast %68 : vector<8xf32> to vector<8x1xf32>
    %70 = vector.broadcast %69 : vector<8x1xf32> to vector<8x8xf32>
    %71 = arith.subf %67, %70 : vector<8x8xf32>
    %72 = math.exp %71 : vector<8x8xf32>
    %cst_29 = arith.constant dense<0.000000e+00> : vector<8xf32>
    %73 = vector.multi_reduction <add>, %72, %cst_29 [1] : vector<8x8xf32> to vector<8xf32>
    %74 = vector.shape_cast %73 : vector<8xf32> to vector<8x1xf32>
    %75 = tpu.reciprocal %74 {approx = true} : vector<8x1xf32> -> vector<8x1xf32>
    %76 = vector.broadcast %75 : vector<8x1xf32> to vector<8x8xf32>
    %77 = arith.mulf %72, %76 : vector<8x8xf32>
    %78 = arith.truncf %77 : vector<8x8xf32> to vector<8x8xbf16>
    %cst_30 = arith.constant dense<0.000000e+00> : vector<8x16xf32>
    %79 = tpu.matmul %78, %66, %cst_30 {dimension_numbers = #tpu.dot_dimension_numbers<[1], [0], [0], [1], [0, 0, 1, 1], [], []>} : vector<8x8xbf16>, vector<8x16xbf16>, vector<8x16xf32> -> vector<8x16xf32>
    %80 = arith.truncf %79 : vector<8x16xf32> to vector<8x16xbf16>
    %81 = vector.extract_strided_slice %42 {offsets = [16, 0], sizes = [16, 128], strides = [1, 1]} : vector<128x128xbf16> to vector<16x128xbf16>
    %cst_31 = arith.constant dense<0.000000e+00> : vector<8x128xf32>
    %82 = tpu.matmul %80, %81, %cst_31 {dimension_numbers = #tpu.dot_dimension_numbers<[1], [0], [0], [1], [0, 0, 1, 1], [], []>} : vector<8x16xbf16>, vector<16x128xbf16>, vector<8x128xf32> -> vector<8x128xf32>
    %83 = arith.addf %63, %82 : vector<8x128xf32>
    %84 = vector.extract_strided_slice %36 {offsets = [0, 32], sizes = [8, 16], strides = [1, 1]} : vector<8x128xbf16> to vector<8x16xbf16>
    %85 = vector.extract_strided_slice %38 {offsets = [0, 32], sizes = [8, 16], strides = [1, 1]} : vector<8x128xbf16> to vector<8x16xbf16>
    %86 = vector.extract_strided_slice %40 {offsets = [0, 32], sizes = [8, 16], strides = [1, 1]} : vector<8x128xbf16> to vector<8x16xbf16>
    %cst_32 = arith.constant dense<0.000000e+00> : vector<8x8xf32>
    %87 = tpu.matmul %84, %85, %cst_32 {dimension_numbers = #tpu.dot_dimension_numbers<[1], [1], [0], [0], [0, 0, 1, 0], [], []>} : vector<8x16xbf16>, vector<8x16xbf16>, vector<8x8xf32> -> vector<8x8xf32>
    %cst_33 = arith.constant dense<0xFF800000> : vector<8xf32>
    %88 = vector.multi_reduction <maximumf>, %87, %cst_33 [1] : vector<8x8xf32> to vector<8xf32>
    %89 = vector.shape_cast %88 : vector<8xf32> to vector<8x1xf32>
    %90 = vector.broadcast %89 : vector<8x1xf32> to vector<8x8xf32>
    %91 = arith.subf %87, %90 : vector<8x8xf32>
    %92 = math.exp %91 : vector<8x8xf32>
    %cst_34 = arith.constant dense<0.000000e+00> : vector<8xf32>
    %93 = vector.multi_reduction <add>, %92, %cst_34 [1] : vector<8x8xf32> to vector<8xf32>
    %94 = vector.shape_cast %93 : vector<8xf32> to vector<8x1xf32>
    %95 = tpu.reciprocal %94 {approx = true} : vector<8x1xf32> -> vector<8x1xf32>
    %96 = vector.broadcast %95 : vector<8x1xf32> to vector<8x8xf32>
    %97 = arith.mulf %92, %96 : vector<8x8xf32>
    %98 = arith.truncf %97 : vector<8x8xf32> to vector<8x8xbf16>
    %cst_35 = arith.constant dense<0.000000e+00> : vector<8x16xf32>
    %99 = tpu.matmul %98, %86, %cst_35 {dimension_numbers = #tpu.dot_dimension_numbers<[1], [0], [0], [1], [0, 0, 1, 1], [], []>} : vector<8x8xbf16>, vector<8x16xbf16>, vector<8x16xf32> -> vector<8x16xf32>
    %100 = arith.truncf %99 : vector<8x16xf32> to vector<8x16xbf16>
    %101 = vector.extract_strided_slice %42 {offsets = [32, 0], sizes = [16, 128], strides = [1, 1]} : vector<128x128xbf16> to vector<16x128xbf16>
    %cst_36 = arith.constant dense<0.000000e+00> : vector<8x128xf32>
    %102 = tpu.matmul %100, %101, %cst_36 {dimension_numbers = #tpu.dot_dimension_numbers<[1], [0], [0], [1], [0, 0, 1, 1], [], []>} : vector<8x16xbf16>, vector<16x128xbf16>, vector<8x128xf32> -> vector<8x128xf32>
    %103 = arith.addf %83, %102 : vector<8x128xf32>
    %104 = vector.extract_strided_slice %36 {offsets = [0, 48], sizes = [8, 16], strides = [1, 1]} : vector<8x128xbf16> to vector<8x16xbf16>
    %105 = vector.extract_strided_slice %38 {offsets = [0, 48], sizes = [8, 16], strides = [1, 1]} : vector<8x128xbf16> to vector<8x16xbf16>
    %106 = vector.extract_strided_slice %40 {offsets = [0, 48], sizes = [8, 16], strides = [1, 1]} : vector<8x128xbf16> to vector<8x16xbf16>
    %cst_37 = arith.constant dense<0.000000e+00> : vector<8x8xf32>
    %107 = tpu.matmul %104, %105, %cst_37 {dimension_numbers = #tpu.dot_dimension_numbers<[1], [1], [0], [0], [0, 0, 1, 0], [], []>} : vector<8x16xbf16>, vector<8x16xbf16>, vector<8x8xf32> -> vector<8x8xf32>
    %cst_38 = arith.constant dense<0xFF800000> : vector<8xf32>
    %108 = vector.multi_reduction <maximumf>, %107, %cst_38 [1] : vector<8x8xf32> to vector<8xf32>
    %109 = vector.shape_cast %108 : vector<8xf32> to vector<8x1xf32>
    %110 = vector.broadcast %109 : vector<8x1xf32> to vector<8x8xf32>
    %111 = arith.subf %107, %110 : vector<8x8xf32>
    %112 = math.exp %111 : vector<8x8xf32>
    %cst_39 = arith.constant dense<0.000000e+00> : vector<8xf32>
    %113 = vector.multi_reduction <add>, %112, %cst_39 [1] : vector<8x8xf32> to vector<8xf32>
    %114 = vector.shape_cast %113 : vector<8xf32> to vector<8x1xf32>
    %115 = tpu.reciprocal %114 {approx = true} : vector<8x1xf32> -> vector<8x1xf32>
    %116 = vector.broadcast %115 : vector<8x1xf32> to vector<8x8xf32>
    %117 = arith.mulf %112, %116 : vector<8x8xf32>
    %118 = arith.truncf %117 : vector<8x8xf32> to vector<8x8xbf16>
    %cst_40 = arith.constant dense<0.000000e+00> : vector<8x16xf32>
    %119 = tpu.matmul %118, %106, %cst_40 {dimension_numbers = #tpu.dot_dimension_numbers<[1], [0], [0], [1], [0, 0, 1, 1], [], []>} : vector<8x8xbf16>, vector<8x16xbf16>, vector<8x16xf32> -> vector<8x16xf32>
    %120 = arith.truncf %119 : vector<8x16xf32> to vector<8x16xbf16>
    %121 = vector.extract_strided_slice %42 {offsets = [48, 0], sizes = [16, 128], strides = [1, 1]} : vector<128x128xbf16> to vector<16x128xbf16>
    %cst_41 = arith.constant dense<0.000000e+00> : vector<8x128xf32>
    %122 = tpu.matmul %120, %121, %cst_41 {dimension_numbers = #tpu.dot_dimension_numbers<[1], [0], [0], [1], [0, 0, 1, 1], [], []>} : vector<8x16xbf16>, vector<16x128xbf16>, vector<8x128xf32> -> vector<8x128xf32>
    %123 = arith.addf %103, %122 : vector<8x128xf32>
    %124 = vector.extract_strided_slice %36 {offsets = [0, 64], sizes = [8, 16], strides = [1, 1]} : vector<8x128xbf16> to vector<8x16xbf16>
    %125 = vector.extract_strided_slice %38 {offsets = [0, 64], sizes = [8, 16], strides = [1, 1]} : vector<8x128xbf16> to vector<8x16xbf16>
    %126 = vector.extract_strided_slice %40 {offsets = [0, 64], sizes = [8, 16], strides = [1, 1]} : vector<8x128xbf16> to vector<8x16xbf16>
    %cst_42 = arith.constant dense<0.000000e+00> : vector<8x8xf32>
    %127 = tpu.matmul %124, %125, %cst_42 {dimension_numbers = #tpu.dot_dimension_numbers<[1], [1], [0], [0], [0, 0, 1, 0], [], []>} : vector<8x16xbf16>, vector<8x16xbf16>, vector<8x8xf32> -> vector<8x8xf32>
    %cst_43 = arith.constant dense<0xFF800000> : vector<8xf32>
    %128 = vector.multi_reduction <maximumf>, %127, %cst_43 [1] : vector<8x8xf32> to vector<8xf32>
    %129 = vector.shape_cast %128 : vector<8xf32> to vector<8x1xf32>
    %130 = vector.broadcast %129 : vector<8x1xf32> to vector<8x8xf32>
    %131 = arith.subf %127, %130 : vector<8x8xf32>
    %132 = math.exp %131 : vector<8x8xf32>
    %cst_44 = arith.constant dense<0.000000e+00> : vector<8xf32>
    %133 = vector.multi_reduction <add>, %132, %cst_44 [1] : vector<8x8xf32> to vector<8xf32>
    %134 = vector.shape_cast %133 : vector<8xf32> to vector<8x1xf32>
    %135 = tpu.reciprocal %134 {approx = true} : vector<8x1xf32> -> vector<8x1xf32>
    %136 = vector.broadcast %135 : vector<8x1xf32> to vector<8x8xf32>
    %137 = arith.mulf %132, %136 : vector<8x8xf32>
    %138 = arith.truncf %137 : vector<8x8xf32> to vector<8x8xbf16>
    %cst_45 = arith.constant dense<0.000000e+00> : vector<8x16xf32>
    %139 = tpu.matmul %138, %126, %cst_45 {dimension_numbers = #tpu.dot_dimension_numbers<[1], [0], [0], [1], [0, 0, 1, 1], [], []>} : vector<8x8xbf16>, vector<8x16xbf16>, vector<8x16xf32> -> vector<8x16xf32>
    %140 = arith.truncf %139 : vector<8x16xf32> to vector<8x16xbf16>
    %141 = vector.extract_strided_slice %42 {offsets = [64, 0], sizes = [16, 128], strides = [1, 1]} : vector<128x128xbf16> to vector<16x128xbf16>
    %cst_46 = arith.constant dense<0.000000e+00> : vector<8x128xf32>
    %142 = tpu.matmul %140, %141, %cst_46 {dimension_numbers = #tpu.dot_dimension_numbers<[1], [0], [0], [1], [0, 0, 1, 1], [], []>} : vector<8x16xbf16>, vector<16x128xbf16>, vector<8x128xf32> -> vector<8x128xf32>
    %143 = arith.addf %123, %142 : vector<8x128xf32>
    %144 = vector.extract_strided_slice %36 {offsets = [0, 80], sizes = [8, 16], strides = [1, 1]} : vector<8x128xbf16> to vector<8x16xbf16>
    %145 = vector.extract_strided_slice %38 {offsets = [0, 80], sizes = [8, 16], strides = [1, 1]} : vector<8x128xbf16> to vector<8x16xbf16>
    %146 = vector.extract_strided_slice %40 {offsets = [0, 80], sizes = [8, 16], strides = [1, 1]} : vector<8x128xbf16> to vector<8x16xbf16>
    %cst_47 = arith.constant dense<0.000000e+00> : vector<8x8xf32>
    %147 = tpu.matmul %144, %145, %cst_47 {dimension_numbers = #tpu.dot_dimension_numbers<[1], [1], [0], [0], [0, 0, 1, 0], [], []>} : vector<8x16xbf16>, vector<8x16xbf16>, vector<8x8xf32> -> vector<8x8xf32>
    %cst_48 = arith.constant dense<0xFF800000> : vector<8xf32>
    %148 = vector.multi_reduction <maximumf>, %147, %cst_48 [1] : vector<8x8xf32> to vector<8xf32>
    %149 = vector.shape_cast %148 : vector<8xf32> to vector<8x1xf32>
    %150 = vector.broadcast %149 : vector<8x1xf32> to vector<8x8xf32>
    %151 = arith.subf %147, %150 : vector<8x8xf32>
    %152 = math.exp %151 : vector<8x8xf32>
    %cst_49 = arith.constant dense<0.000000e+00> : vector<8xf32>
    %153 = vector.multi_reduction <add>, %152, %cst_49 [1] : vector<8x8xf32> to vector<8xf32>
    %154 = vector.shape_cast %153 : vector<8xf32> to vector<8x1xf32>
    %155 = tpu.reciprocal %154 {approx = true} : vector<8x1xf32> -> vector<8x1xf32>
    %156 = vector.broadcast %155 : vector<8x1xf32> to vector<8x8xf32>
    %157 = arith.mulf %152, %156 : vector<8x8xf32>
    %158 = arith.truncf %157 : vector<8x8xf32> to vector<8x8xbf16>
    %cst_50 = arith.constant dense<0.000000e+00> : vector<8x16xf32>
    %159 = tpu.matmul %158, %146, %cst_50 {dimension_numbers = #tpu.dot_dimension_numbers<[1], [0], [0], [1], [0, 0, 1, 1], [], []>} : vector<8x8xbf16>, vector<8x16xbf16>, vector<8x16xf32> -> vector<8x16xf32>
    %160 = arith.truncf %159 : vector<8x16xf32> to vector<8x16xbf16>
    %161 = vector.extract_strided_slice %42 {offsets = [80, 0], sizes = [16, 128], strides = [1, 1]} : vector<128x128xbf16> to vector<16x128xbf16>
    %cst_51 = arith.constant dense<0.000000e+00> : vector<8x128xf32>
    %162 = tpu.matmul %160, %161, %cst_51 {dimension_numbers = #tpu.dot_dimension_numbers<[1], [0], [0], [1], [0, 0, 1, 1], [], []>} : vector<8x16xbf16>, vector<16x128xbf16>, vector<8x128xf32> -> vector<8x128xf32>
    %163 = arith.addf %143, %162 : vector<8x128xf32>
    %164 = vector.extract_strided_slice %36 {offsets = [0, 96], sizes = [8, 16], strides = [1, 1]} : vector<8x128xbf16> to vector<8x16xbf16>
    %165 = vector.extract_strided_slice %38 {offsets = [0, 96], sizes = [8, 16], strides = [1, 1]} : vector<8x128xbf16> to vector<8x16xbf16>
    %166 = vector.extract_strided_slice %40 {offsets = [0, 96], sizes = [8, 16], strides = [1, 1]} : vector<8x128xbf16> to vector<8x16xbf16>
    %cst_52 = arith.constant dense<0.000000e+00> : vector<8x8xf32>
    %167 = tpu.matmul %164, %165, %cst_52 {dimension_numbers = #tpu.dot_dimension_numbers<[1], [1], [0], [0], [0, 0, 1, 0], [], []>} : vector<8x16xbf16>, vector<8x16xbf16>, vector<8x8xf32> -> vector<8x8xf32>
    %cst_53 = arith.constant dense<0xFF800000> : vector<8xf32>
    %168 = vector.multi_reduction <maximumf>, %167, %cst_53 [1] : vector<8x8xf32> to vector<8xf32>
    %169 = vector.shape_cast %168 : vector<8xf32> to vector<8x1xf32>
    %170 = vector.broadcast %169 : vector<8x1xf32> to vector<8x8xf32>
    %171 = arith.subf %167, %170 : vector<8x8xf32>
    %172 = math.exp %171 : vector<8x8xf32>
    %cst_54 = arith.constant dense<0.000000e+00> : vector<8xf32>
    %173 = vector.multi_reduction <add>, %172, %cst_54 [1] : vector<8x8xf32> to vector<8xf32>
    %174 = vector.shape_cast %173 : vector<8xf32> to vector<8x1xf32>
    %175 = tpu.reciprocal %174 {approx = true} : vector<8x1xf32> -> vector<8x1xf32>
    %176 = vector.broadcast %175 : vector<8x1xf32> to vector<8x8xf32>
    %177 = arith.mulf %172, %176 : vector<8x8xf32>
    %178 = arith.truncf %177 : vector<8x8xf32> to vector<8x8xbf16>
    %cst_55 = arith.constant dense<0.000000e+00> : vector<8x16xf32>
    %179 = tpu.matmul %178, %166, %cst_55 {dimension_numbers = #tpu.dot_dimension_numbers<[1], [0], [0], [1], [0, 0, 1, 1], [], []>} : vector<8x8xbf16>, vector<8x16xbf16>, vector<8x16xf32> -> vector<8x16xf32>
    %180 = arith.truncf %179 : vector<8x16xf32> to vector<8x16xbf16>
    %181 = vector.extract_strided_slice %42 {offsets = [96, 0], sizes = [16, 128], strides = [1, 1]} : vector<128x128xbf16> to vector<16x128xbf16>
    %cst_56 = arith.constant dense<0.000000e+00> : vector<8x128xf32>
    %182 = tpu.matmul %180, %181, %cst_56 {dimension_numbers = #tpu.dot_dimension_numbers<[1], [0], [0], [1], [0, 0, 1, 1], [], []>} : vector<8x16xbf16>, vector<16x128xbf16>, vector<8x128xf32> -> vector<8x128xf32>
    %183 = arith.addf %163, %182 : vector<8x128xf32>
    %184 = vector.extract_strided_slice %36 {offsets = [0, 112], sizes = [8, 16], strides = [1, 1]} : vector<8x128xbf16> to vector<8x16xbf16>
    %185 = vector.extract_strided_slice %38 {offsets = [0, 112], sizes = [8, 16], strides = [1, 1]} : vector<8x128xbf16> to vector<8x16xbf16>
    %186 = vector.extract_strided_slice %40 {offsets = [0, 112], sizes = [8, 16], strides = [1, 1]} : vector<8x128xbf16> to vector<8x16xbf16>
    %cst_57 = arith.constant dense<0.000000e+00> : vector<8x8xf32>
    %187 = tpu.matmul %184, %185, %cst_57 {dimension_numbers = #tpu.dot_dimension_numbers<[1], [1], [0], [0], [0, 0, 1, 0], [], []>} : vector<8x16xbf16>, vector<8x16xbf16>, vector<8x8xf32> -> vector<8x8xf32>
    %cst_58 = arith.constant dense<0xFF800000> : vector<8xf32>
    %188 = vector.multi_reduction <maximumf>, %187, %cst_58 [1] : vector<8x8xf32> to vector<8xf32>
    %189 = vector.shape_cast %188 : vector<8xf32> to vector<8x1xf32>
    %190 = vector.broadcast %189 : vector<8x1xf32> to vector<8x8xf32>
    %191 = arith.subf %187, %190 : vector<8x8xf32>
    %192 = math.exp %191 : vector<8x8xf32>
    %cst_59 = arith.constant dense<0.000000e+00> : vector<8xf32>
    %193 = vector.multi_reduction <add>, %192, %cst_59 [1] : vector<8x8xf32> to vector<8xf32>
    %194 = vector.shape_cast %193 : vector<8xf32> to vector<8x1xf32>
    %195 = tpu.reciprocal %194 {approx = true} : vector<8x1xf32> -> vector<8x1xf32>
    %196 = vector.broadcast %195 : vector<8x1xf32> to vector<8x8xf32>
    %197 = arith.mulf %192, %196 : vector<8x8xf32>
    %198 = arith.truncf %197 : vector<8x8xf32> to vector<8x8xbf16>
    %cst_60 = arith.constant dense<0.000000e+00> : vector<8x16xf32>
    %199 = tpu.matmul %198, %186, %cst_60 {dimension_numbers = #tpu.dot_dimension_numbers<[1], [0], [0], [1], [0, 0, 1, 1], [], []>} : vector<8x8xbf16>, vector<8x16xbf16>, vector<8x16xf32> -> vector<8x16xf32>
    %200 = arith.truncf %199 : vector<8x16xf32> to vector<8x16xbf16>
    %201 = vector.extract_strided_slice %42 {offsets = [112, 0], sizes = [16, 128], strides = [1, 1]} : vector<128x128xbf16> to vector<16x128xbf16>
    %cst_61 = arith.constant dense<0.000000e+00> : vector<8x128xf32>
    %202 = tpu.matmul %200, %201, %cst_61 {dimension_numbers = #tpu.dot_dimension_numbers<[1], [0], [0], [1], [0, 0, 1, 1], [], []>} : vector<8x16xbf16>, vector<16x128xbf16>, vector<8x128xf32> -> vector<8x128xf32>
    %203 = arith.addf %183, %202 : vector<8x128xf32>
    %204 = arith.addf %4, %203 : vector<8x128xf32>
    %c0_62 = arith.constant 0 : index
    %c0_63 = arith.constant 0 : index
    %c0_64 = arith.constant 0 : index
    %205 = vector.load %arg7[%c0_62, %c0_63, %c0_64] : memref<1x1x128xf32, #tpu.memory_space<vmem>>, vector<1x1x128xf32>
    %206 = vector.shape_cast %205 : vector<1x1x128xf32> to vector<1x128xf32>
    %207 = vector.broadcast %206 : vector<1x128xf32> to vector<8x128xf32>
    %208 = arith.addf %204, %207 : vector<8x128xf32>
    %c0_65 = arith.constant 0 : index
    %c0_66 = arith.constant 0 : index
    %c0_67 = arith.constant 0 : index
    %209 = vector.load %arg8[%c0_65, %c0_66, %c0_67] : memref<1x8x128xf32, #tpu.memory_space<vmem>>, vector<1x8x128xf32>
    %210 = vector.shape_cast %209 : vector<1x8x128xf32> to vector<8x128xf32>
    %211 = vector.shape_cast %208 : vector<8x128xf32> to vector<1x8x128xf32>
    tpu.vector_store %arg8[%c0_65, %c0_66, %c0_67], %211 {strides = array<i32>} : memref<1x8x128xf32, #tpu.memory_space<vmem>>, vector<1x8x128xf32>,
    return
  }
  func.func @transform_0(%arg0: i32, %arg1: i32) -> (i32, i32, i32) {
    %c0_i32 = arith.constant 0 : i32
    %c0_i32_0 = arith.constant 0 : i32
    %c0_i32_1 = arith.constant 0 : i32
    return %arg0, %c0_i32, %c0_i32_0 : i32, i32, i32
  }
  func.func @transform_1(%arg0: i32, %arg1: i32) -> (i32, i32, i32) {
    %c0_i32 = arith.constant 0 : i32
    %c0_i32_0 = arith.constant 0 : i32
    %c0_i32_1 = arith.constant 0 : i32
    return %arg1, %c0_i32, %c0_i32_0 : i32, i32, i32
  }
  func.func @transform_2(%arg0: i32, %arg1: i32) -> (i32, i32, i32) {
    %c0_i32 = arith.constant 0 : i32
    %c0_i32_0 = arith.constant 0 : i32
    %c0_i32_1 = arith.constant 0 : i32
    return %arg1, %c0_i32, %c0_i32_0 : i32, i32, i32
  }
  func.func @transform_3(%arg0: i32, %arg1: i32) -> (i32, i32, i32) {
    %c0_i32 = arith.constant 0 : i32
    %c0_i32_0 = arith.constant 0 : i32
    %c0_i32_1 = arith.constant 0 : i32
    return %arg1, %c0_i32, %c0_i32_0 : i32, i32, i32
  }
  func.func @transform_4(%arg0: i32, %arg1: i32) -> (i32, i32, i32) {
    %c0_i32 = arith.constant 0 : i32
    %c0_i32_0 = arith.constant 0 : i32
    %c0_i32_1 = arith.constant 0 : i32
    return %arg1, %c0_i32, %c0_i32_0 : i32, i32, i32
  }
  func.func @transform_5(%arg0: i32, %arg1: i32) -> (i32, i32, i32) {
    %c0_i32 = arith.constant 0 : i32
    %c0_i32_0 = arith.constant 0 : i32
    %c0_i32_1 = arith.constant 0 : i32
    return %arg1, %c0_i32, %c0_i32_0 : i32, i32, i32
  }
  func.func @transform_6(%arg0: i32, %arg1: i32) -> (i32, i32, i32) {
    %c0_i32 = arith.constant 0 : i32
    %c0_i32_0 = arith.constant 0 : i32
    %c0_i32_1 = arith.constant 0 : i32
    return %arg0, %c0_i32, %c0_i32_0 : i32, i32, i32
  }
}

</mosaic_0001>

<llo_original>
// kernel: tpu_custom_call.1
$region0: #{tpu_custom_call.1}
  #allocation0 [shape = 'u32[]', space=smem, size = 0x4, offset = 0x4, fixed_abs, tag = 'smem constant byte address 0x4 - core index']
  #allocation1 [shape = 'u32[144,128]{1,0:T(1,128)}', space=vmem, size = 0x12000, scoped, tag = 'internal scratch']
  %s0 = inlined_call_operand.hbm [shape: f32[2,8,128], index: 0, kind: input, shape index: {}]
  %s1 = inlined_call_operand.hbm [shape: f32[2,1,128], index: 1, kind: input, shape index: {}]
  %s2 = inlined_call_operand.vmem [shape: f32[2,1,128], index: 2, kind: input, shape index: {}]
  %s3 = inlined_call_operand.hbm [shape: bf16[2,128,384], index: 3, kind: input, shape index: {}]
  %s4 = inlined_call_operand.hbm [shape: bf16[2,128,128], index: 4, kind: input, shape index: {}]
  %s5 = inlined_call_operand.vmem [shape: f32[2,1,128], index: 5, kind: input, shape index: {}]
  %s6 = inlined_call_operand.hbm [shape: f32[2,8,128], index: 6, kind: output, shape index: {}]
  %s7 = sld [smem:[#allocation0]]
  $region77: #{tpu_custom_call.1} parent=0
    _
  %s9 = ssub.s32 1, %s7
  %s10 = scalar_select 0, %s9, %s7
  $region1: #{tpu_custom_call.1} parent=0
    #allocation2 [shape = 'u8[8192]{0}', space=vmem, size = 0x2000, scoped, tag = 'input window, operand 0']
    #allocation3 [shape = 's32[2]{0}', space=sflag, size = 0x8, scoped, tag = 'scoped memory for tpu_custom_call.1']
    #allocation4 [shape = 's32[2]{0}', space=sflag, size = 0x8, scoped, tag = 'scoped memory for tpu_custom_call.1']
    #allocation5 [shape = 'u8[1024]{0}', space=vmem, size = 0x400, scoped, tag = 'input window, operand 1']
    #allocation6 [shape = 's32[2]{0}', space=sflag, size = 0x8, scoped, tag = 'scoped memory for tpu_custom_call.1']
    #allocation7 [shape = 'u8[196608]{0}', space=vmem, size = 0x30000, scoped, tag = 'input window, operand 3']
    #allocation8 [shape = 'u8[65536]{0}', space=vmem, size = 0x10000, scoped, tag = 'input window, operand 4']
    #allocation9 [shape = 's32[2]{0}', space=sflag, size = 0x8, scoped, tag = 'scoped memory for tpu_custom_call.1']
    #allocation10 [shape = 'u8[8192]{0}', space=vmem, size = 0x2000, scoped, tag = 'output window, operand 0']
    %11 = vsyncpa [#allocation3], 0
    %s12 = scalar_lea.sflag [#allocation3], 1
    %13 = vsyncpa %s12, 0
    %14 = vsyncpa [#allocation6], 0
    %s15 = scalar_lea.sflag [#allocation6], 1
    %16 = vsyncpa %s15, 0
    %17 = vsyncpa [#allocation9], 0
    %s18 = scalar_lea.sflag [#allocation9], 1
    %19 = vsyncpa %s18, 0
    %20 = vsyncpa [#allocation4], 0
    %s21 = scalar_lea.sflag [#allocation4], 1
    %22 = vsyncpa %s21, 0
    loop: start=0, step=1, limit=6
    $region2: #{tpu_custom_call.1} parent=1 // loop_pre_header
      _
    $region3: #{tpu_custom_call.1} parent=1 // loop_header
      %s24 = sphi 0, %s28
      %p25 = scmp.ge.s32.totalorder %s24, 6
      %s31 = sphi 0, %s43
      %s32 = sphi 0, %s39
      %s33 = sphi 0, %s31
      %s34 = sphi 0, %s32
      %s35 = sphi 0, %s33
      %s36 = sphi 0, %s34
      %s46 = sphi 0, %s48
      %s49 = sphi 0, %s46
      %s50 = sphi 0, %s49
      %s66 = sphi 0, %s50
      %s72 = sphi 0, %s74
      %s75 = sphi 0, %s72
      %s76 = sphi 0, %s75
      %s92 = sphi 0, %s76
      %s98 = sphi 0, %s100
      %s101 = sphi 0, %s98
      %s102 = sphi 0, %s101
      %s118 = sphi 0, %s102
      %s124 = sphi 0, %s126
      %s127 = sphi 0, %s124
      %s128 = sphi 0, %s127
      %s144 = sphi 0, %s128
      %s150 = sphi 0, %s152
      %s153 = sphi 0, %s150
      %s154 = sphi 0, %s153
      %s170 = sphi 0, %s154
      %s176 = sphi 0, %s178
      %s179 = sphi 0, %s176
      %s180 = sphi 0, %s179
      %s196 = sphi 0, %s180
      %s202 = sphi 0, %s204
      %s205 = sphi 0, %s202
      %s206 = sphi 0, %s205
      %s222 = sphi 0, %s206
    $region4: #{tpu_custom_call.1} parent=1 // loop_header_branch
      %27 = sbr.rel (%p25) target = $region8
    $region5: #{tpu_custom_call.1} parent=1 // loop_body
      %s29 = ssub.s32 %s24, 1
      %s30 = ssub.s32 %s24, 2
      %s37 = sadd.s32 1, %s32
      %p38 = scmp.ge.s32.totalorder %s37, 2
      %s39 = scalar_select %p38, 0, %s37
      %s40 = sadd.s32 1, %s31
      %s41 = scalar_select %p38, %s40, %s31
      %p42 = scmp.ge.s32.totalorder %s41, 2
      %s43 = scalar_select %p42, 0, %s41
      %s44 = ssub.s32 %s31, %s43
      %p45 = scmp.eq.s32.totalorder %s44, 0
      %s47 = sadd.s32 %s46, 1
      %s48 = scalar_select %p45, %s46, %s47
      %p51 = pneg %p45
      %p52 = scmp.eq.s32.totalorder %s24, 3
      %p53 = por %p51, %p52
      %p54 = scmp.ne.s32.totalorder %s46, %s49
      %p55 = scmp.eq.s32.totalorder %s24, 0
      %p56 = por %p54, %p55
      %p57 = scmp.ne.s32.totalorder %s46, %s49
      %p58 = scmp.eq.s32.totalorder %s29, 3
      %p59 = por %p57, %p58
      %p60 = scmp.ne.s32.totalorder %s49, %s50
      %p61 = scmp.eq.s32.totalorder %s29, 0
      %p62 = por %p60, %p61
      %p63 = scmp.ne.s32.totalorder %s49, %s50
      %p64 = scmp.eq.s32.totalorder %s30, 3
      %p65 = por %p63, %p64
      %p67 = scmp.ne.s32.totalorder %s50, %s66
      %p68 = scmp.eq.s32.totalorder %s30, 0
      %p69 = por %p67, %p68
      %s70 = ssub.s32 %s32, %s39
      %p71 = scmp.eq.s32.totalorder %s70, 0
      %s73 = sadd.s32 %s72, 1
      %s74 = scalar_select %p71, %s72, %s73
      %p77 = pneg %p71
      %p78 = scmp.eq.s32.totalorder %s24, 3
      %p79 = por %p77, %p78
      %p80 = scmp.ne.s32.totalorder %s72, %s75
      %p81 = scmp.eq.s32.totalorder %s24, 0
      %p82 = por %p80, %p81
      %p83 = scmp.ne.s32.totalorder %s72, %s75
      %p84 = scmp.eq.s32.totalorder %s29, 3
      %p85 = por %p83, %p84
      %p86 = scmp.ne.s32.totalorder %s75, %s76
      %p87 = scmp.eq.s32.totalorder %s29, 0
      %p88 = por %p86, %p87
      %p89 = scmp.ne.s32.totalorder %s75, %s76
      %p90 = scmp.eq.s32.totalorder %s30, 3
      %p91 = por %p89, %p90
      %p93 = scmp.ne.s32.totalorder %s76, %s92
      %p94 = scmp.eq.s32.totalorder %s30, 0
      %p95 = por %p93, %p94
      %s96 = ssub.s32 %s32, %s39
      %p97 = scmp.eq.s32.totalorder %s96, 0
      %s99 = sadd.s32 %s98, 1
      %s100 = scalar_select %p97, %s98, %s99
      %p103 = pneg %p97
      %p104 = scmp.eq.s32.totalorder %s24, 3
      %p105 = por %p103, %p104
      %p106 = scmp.ne.s32.totalorder %s98, %s101
      %p107 = scmp.eq.s32.totalorder %s24, 0
      %p108 = por %p106, %p107
      %p109 = scmp.ne.s32.totalorder %s98, %s101
      %p110 = scmp.eq.s32.totalorder %s29, 3
      %p111 = por %p109, %p110
      %p112 = scmp.ne.s32.totalorder %s101, %s102
      %p113 = scmp.eq.s32.totalorder %s29, 0
      %p114 = por %p112, %p113
      %p115 = scmp.ne.s32.totalorder %s101, %s102
      %p116 = scmp.eq.s32.totalorder %s30, 3
      %p117 = por %p115, %p116
      %p119 = scmp.ne.s32.totalorder %s102, %s118
      %p120 = scmp.eq.s32.totalorder %s30, 0
      %p121 = por %p119, %p120
      %s122 = ssub.s32 %s32, %s39
      %p123 = scmp.eq.s32.totalorder %s122, 0
      %s125 = sadd.s32 %s124, 1
      %s126 = scalar_select %p123, %s124, %s125
      %p129 = pneg %p123
      %p130 = scmp.eq.s32.totalorder %s24, 3
      %p131 = por %p129, %p130
      %p132 = scmp.ne.s32.totalorder %s124, %s127
      %p133 = scmp.eq.s32.totalorder %s24, 0
      %p134 = por %p132, %p133
      %p135 = scmp.ne.s32.totalorder %s124, %s127
      %p136 = scmp.eq.s32.totalorder %s29, 3
      %p137 = por %p135, %p136
      %p138 = scmp.ne.s32.totalorder %s127, %s128
      %p139 = scmp.eq.s32.totalorder %s29, 0
      %p140 = por %p138, %p139
      %p141 = scmp.ne.s32.totalorder %s127, %s128
      %p142 = scmp.eq.s32.totalorder %s30, 3
      %p143 = por %p141, %p142
      %p145 = scmp.ne.s32.totalorder %s128, %s144
      %p146 = scmp.eq.s32.totalorder %s30, 0
      %p147 = por %p145, %p146
      %s148 = ssub.s32 %s32, %s39
      %p149 = scmp.eq.s32.totalorder %s148, 0
      %s151 = sadd.s32 %s150, 1
      %s152 = scalar_select %p149, %s150, %s151
      %p155 = pneg %p149
      %p156 = scmp.eq.s32.totalorder %s24, 3
      %p157 = por %p155, %p156
      %p158 = scmp.ne.s32.totalorder %s150, %s153
      %p159 = scmp.eq.s32.totalorder %s24, 0
      %p160 = por %p158, %p159
      %p161 = scmp.ne.s32.totalorder %s150, %s153
      %p162 = scmp.eq.s32.totalorder %s29, 3
      %p163 = por %p161, %p162
      %p164 = scmp.ne.s32.totalorder %s153, %s154
      %p165 = scmp.eq.s32.totalorder %s29, 0
      %p166 = por %p164, %p165
      %p167 = scmp.ne.s32.totalorder %s153, %s154
      %p168 = scmp.eq.s32.totalorder %s30, 3
      %p169 = por %p167, %p168
      %p171 = scmp.ne.s32.totalorder %s154, %s170
      %p172 = scmp.eq.s32.totalorder %s30, 0
      %p173 = por %p171, %p172
      %s174 = ssub.s32 %s32, %s39
      %p175 = scmp.eq.s32.totalorder %s174, 0
      %s177 = sadd.s32 %s176, 1
      %s178 = scalar_select %p175, %s176, %s177
      %p181 = pneg %p175
      %p182 = scmp.eq.s32.totalorder %s24, 3
      %p183 = por %p181, %p182
      %p184 = scmp.ne.s32.totalorder %s176, %s179
      %p185 = scmp.eq.s32.totalorder %s24, 0
      %p186 = por %p184, %p185
      %p187 = scmp.ne.s32.totalorder %s176, %s179
      %p188 = scmp.eq.s32.totalorder %s29, 3
      %p189 = por %p187, %p188
      %p190 = scmp.ne.s32.totalorder %s179, %s180
      %p191 = scmp.eq.s32.totalorder %s29, 0
      %p192 = por %p190, %p191
      %p193 = scmp.ne.s32.totalorder %s179, %s180
      %p194 = scmp.eq.s32.totalorder %s30, 3
      %p195 = por %p193, %p194
      %p197 = scmp.ne.s32.totalorder %s180, %s196
      %p198 = scmp.eq.s32.totalorder %s30, 0
      %p199 = por %p197, %p198
      %s200 = ssub.s32 %s31, %s43
      %p201 = scmp.eq.s32.totalorder %s200, 0
      %s203 = sadd.s32 %s202, 1
      %s204 = scalar_select %p201, %s202, %s203
      %p207 = pneg %p201
      %p208 = scmp.eq.s32.totalorder %s24, 3
      %p209 = por %p207, %p208
      %p210 = scmp.ne.s32.totalorder %s202, %s205
      %p211 = scmp.eq.s32.totalorder %s24, 0
      %p212 = por %p210, %p211
      %p213 = scmp.ne.s32.totalorder %s202, %s205
      %p214 = scmp.eq.s32.totalorder %s29, 3
      %p215 = por %p213, %p214
      %p216 = scmp.ne.s32.totalorder %s205, %s206
      %p217 = scmp.eq.s32.totalorder %s29, 0
      %p218 = por %p216, %p217
      %p219 = scmp.ne.s32.totalorder %s205, %s206
      %p220 = scmp.eq.s32.totalorder %s30, 3
      %p221 = por %p219, %p220
      %p223 = scmp.ne.s32.totalorder %s206, %s222
      %p224 = scmp.eq.s32.totalorder %s30, 0
      %p225 = por %p223, %p224
      %p226 = scmp.le.s32.totalorder 1, %s24
      %p227 = scmp.lt.s32.totalorder %s24, 5
      %p228 = pnand %p226, %p227
      %p229 = pneg %p228
      // Predicated region
      $region9: #{tpu_custom_call.1} parent=5 // pred_check
        _
      $region10: #{tpu_custom_call.1} parent=5 // pred_check_branch
        %231 = sbr.rel (%p228) target = $region12
      $region11: #{tpu_custom_call.1} parent=5 // pred_region
        %s232 = ssub.s32 %s24, 1
      $region12: #{tpu_custom_call.1} parent=5 // pred_fallthru
        _
      %p233 = scmp.lt.s32.totalorder %s24, 4
      // Predicated region
      $region13: #{tpu_custom_call.1} parent=5 // pred_check
        %p234 = pneg %p233
      $region14: #{tpu_custom_call.1} parent=5 // pred_check_branch
        %236 = sbr.rel (%p234) target = $region16
      $region15: #{tpu_custom_call.1} parent=5 // pred_region
        // Predicated region
        $region17: #{tpu_custom_call.1} parent=15 // pred_check
          %p237 = pneg %p56
        $region18: #{tpu_custom_call.1} parent=15 // pred_check_branch
          %239 = sbr.rel (%p237) target = $region20
        $region19: #{tpu_custom_call.1} parent=15 // pred_region
          %s240 = sand.u32 %s46, 1
          %s241 = scalar_lea.sflag [#allocation3], %s240
          %s242 = sand.u32 %s46, 1
          %s243 = smul.addr %s242, 8
          %s244 = scalar_lea.vmem [#allocation2], %s243
          %s246 = ssub.s32 128, 128
          %247 = vsyncadd %s241, %s246
          %s248 = smul.addr %s31, 128
          %s249 = scalar_lea.hbm %s0, %s248
          %s251 = sshll.u32 %s244, 4
          %s252 = int_to_ptr.vmem [resolvable:$true] %s251
          %254 = dma.hbm_to_vmem [thread:$0]  %s249, 128, %s252, %s241
        $region20: #{tpu_custom_call.1} parent=15 // pred_fallthru
          _
        // Predicated region
        $region21: #{tpu_custom_call.1} parent=15 // pred_check
          %p255 = pneg %p82
        $region22: #{tpu_custom_call.1} parent=15 // pred_check_branch
          %257 = sbr.rel (%p255) target = $region24
        $region23: #{tpu_custom_call.1} parent=15 // pred_region
          %s258 = sand.u32 %s24, 1
          %s259 = scalar_lea.sflag [#allocation6], %s258
          %s260 = sand.u32 %s72, 1
          %s261 = scalar_lea.vmem [#allocation5], %s260
          %s263 = ssub.s32 16, 16
          %264 = vsyncadd %s259, %s263
          %s265 = smul.addr %s32, 16
          %s266 = scalar_lea.hbm %s1, %s265
          %s268 = sshll.u32 %s261, 4
          %s269 = int_to_ptr.vmem [resolvable:$true] %s268
          %271 = dma.hbm_to_vmem [thread:$0]  %s266, 16, %s269, %s259
        $region24: #{tpu_custom_call.1} parent=15 // pred_fallthru
          _
        // Predicated region
        $region25: #{tpu_custom_call.1} parent=15 // pred_check
          %p272 = pneg %p108
        $region26: #{tpu_custom_call.1} parent=15 // pred_check_branch
          %274 = sbr.rel (%p272) target = $region28
        $region27: #{tpu_custom_call.1} parent=15 // pred_region
          %p275 = scmp.lt.s32.totalorder %s32, 1
          %s276 = scalar_select %p275, %s32, 1
          %s277 = scalar_lea.vmem %s2, %s276
        $region28: #{tpu_custom_call.1} parent=15 // pred_fallthru
          _
        // Predicated region
        $region29: #{tpu_custom_call.1} parent=15 // pred_check
          %p278 = pneg %p134
        $region30: #{tpu_custom_call.1} parent=15 // pred_check_branch
          %280 = sbr.rel (%p278) target = $region32
        $region31: #{tpu_custom_call.1} parent=15 // pred_region
          %s281 = sand.u32 %s24, 1
          %s282 = scalar_lea.sflag [#allocation6], %s281
          %s283 = sand.u32 %s124, 1
          %s284 = smul.addr %s283, 192
          %s285 = scalar_lea.vmem [#allocation7], %s284
          %s287 = ssub.s32 3072, 3072
          %288 = vsyncadd %s282, %s287
          %s289 = smul.addr %s32, 48
          %s290 = smul.addr %s289, 64
          %s291 = scalar_lea.hbm %s3, %s290
          %s292 = sshll.u32 %s285, 4
          %s293 = int_to_ptr.vmem [resolvable:$true] %s292
          %298 = dma.hbm_to_vmem [thread:$0]  %s291, 3072, %s293, %s282, 192, 192, 12
        $region32: #{tpu_custom_call.1} parent=15 // pred_fallthru
          _
        // Predicated region
        $region33: #{tpu_custom_call.1} parent=15 // pred_check
          %p299 = pneg %p160
        $region34: #{tpu_custom_call.1} parent=15 // pred_check_branch
          %301 = sbr.rel (%p299) target = $region36
        $region35: #{tpu_custom_call.1} parent=15 // pred_region
          %s302 = sand.u32 %s150, 1
          %s303 = scalar_lea.sflag [#allocation9], %s302
          %s304 = sand.u32 %s150, 1
          %s305 = smul.addr %s304, 64
          %s306 = scalar_lea.vmem [#allocation8], %s305
          %s308 = ssub.s32 1024, 1024
          %309 = vsyncadd %s303, %s308
          %s310 = smul.addr %s32, 16
          %s311 = smul.addr %s310, 64
          %s312 = scalar_lea.hbm %s4, %s311
          %s313 = sshll.u32 %s306, 4
          %s314 = int_to_ptr.vmem [resolvable:$true] %s313
          %319 = dma.hbm_to_vmem [thread:$0]  %s312, 1024, %s314, %s303, 64, 64, 4
        $region36: #{tpu_custom_call.1} parent=15 // pred_fallthru
          _
        // Predicated region
        $region37: #{tpu_custom_call.1} parent=15 // pred_check
          %p320 = pneg %p186
        $region38: #{tpu_custom_call.1} parent=15 // pred_check_branch
          %322 = sbr.rel (%p320) target = $region40
        $region39: #{tpu_custom_call.1} parent=15 // pred_region
          %p323 = scmp.lt.s32.totalorder %s32, 1
          %s324 = scalar_select %p323, %s32, 1
          %s325 = scalar_lea.vmem %s5, %s324
        $region40: #{tpu_custom_call.1} parent=15 // pred_fallthru
          _
      $region16: #{tpu_custom_call.1} parent=5 // pred_fallthru
        _
      %p326 = scmp.le.s32.totalorder 1, %s24
      %p327 = scmp.lt.s32.totalorder %s24, 5
      %p328 = pnand %p326, %p327
      %p329 = pneg %p328
      // Predicated region
      $region41: #{tpu_custom_call.1} parent=5 // pred_check
        _
      $region42: #{tpu_custom_call.1} parent=5 // pred_check_branch
        %331 = sbr.rel (%p328) target = $region44
      $region43: #{tpu_custom_call.1} parent=5 // pred_region
        %s332 = ssub.s32 %s24, 1
        %s333 = sand.u32 %s49, 1
        %s334 = scalar_lea.sflag [#allocation3], %s333
        %s335 = sand.u32 %s49, 1
        %s336 = smul.addr %s335, 8
        %s337 = scalar_lea.vmem [#allocation2], %s336
        // Predicated region
        $region45: #{tpu_custom_call.1} parent=43 // pred_check
          %p338 = pneg %p62
        $region46: #{tpu_custom_call.1} parent=43 // pred_check_branch
          %340 = sbr.rel (%p338) target = $region48
        $region47: #{tpu_custom_call.1} parent=43 // pred_region
          %341 = dma.done %s334, 128
        $region48: #{tpu_custom_call.1} parent=43 // pred_fallthru
          _
        %s342 = sand.u32 %s29, 1
        %s343 = scalar_lea.sflag [#allocation6], %s342
        %s344 = sand.u32 %s75, 1
        %s345 = scalar_lea.vmem [#allocation5], %s344
        // Predicated region
        $region49: #{tpu_custom_call.1} parent=43 // pred_check
          %p346 = pneg %p88
        $region50: #{tpu_custom_call.1} parent=43 // pred_check_branch
          %348 = sbr.rel (%p346) target = $region52
        $region51: #{tpu_custom_call.1} parent=43 // pred_region
          %349 = dma.done %s343, 16
        $region52: #{tpu_custom_call.1} parent=43 // pred_fallthru
          _
        %s350 = sand.u32 %s29, 1
        %s351 = scalar_lea.sflag [#allocation6], %s350
        %s352 = sand.u32 %s127, 1
        %s353 = smul.addr %s352, 192
        %s354 = scalar_lea.vmem [#allocation7], %s353
        // Predicated region
        $region53: #{tpu_custom_call.1} parent=43 // pred_check
          %p355 = pneg %p140
        $region54: #{tpu_custom_call.1} parent=43 // pred_check_branch
          %357 = sbr.rel (%p355) target = $region56
        $region55: #{tpu_custom_call.1} parent=43 // pred_region
          %358 = dma.done %s351, 3072
        $region56: #{tpu_custom_call.1} parent=43 // pred_fallthru
          _
        %s359 = sand.u32 %s153, 1
        %s360 = scalar_lea.sflag [#allocation9], %s359
        %s361 = sand.u32 %s153, 1
        %s362 = smul.addr %s361, 64
        %s363 = scalar_lea.vmem [#allocation8], %s362
        // Predicated region
        $region57: #{tpu_custom_call.1} parent=43 // pred_check
          %p364 = pneg %p166
        $region58: #{tpu_custom_call.1} parent=43 // pred_check_branch
          %366 = sbr.rel (%p364) target = $region60
        $region59: #{tpu_custom_call.1} parent=43 // pred_region
          %367 = dma.done %s360, 1024
        $region60: #{tpu_custom_call.1} parent=43 // pred_fallthru
          _
        %s368 = sand.u32 %s49, 1
        %s369 = scalar_lea.sflag [#allocation3], %s368
        %s370 = sand.u32 %s49, 1
        %s371 = smul.addr %s370, 8
        %s372 = scalar_lea.vmem [#allocation2], %s371
        %p373 = pneg %p62
        %p374 = pneg %p59
        %s375 = sand.u32 %s29, 1
        %s376 = scalar_lea.sflag [#allocation6], %s375
        %s377 = sand.u32 %s75, 1
        %s378 = scalar_lea.vmem [#allocation5], %s377
        %p379 = pneg %p88
        %p380 = pneg %p85
        %p381 = scmp.lt.s32.totalorder %s34, 1
        %s382 = scalar_select %p381, %s34, 1
        %s383 = scalar_lea.vmem %s2, %s382
        %p384 = pneg %p114
        %p385 = pneg %p111
        %s386 = sand.u32 %s29, 1
        %s387 = scalar_lea.sflag [#allocation6], %s386
        %s388 = sand.u32 %s127, 1
        %s389 = smul.addr %s388, 192
        %s390 = scalar_lea.vmem [#allocation7], %s389
        %p391 = pneg %p140
        %p392 = pneg %p137
        %s393 = sand.u32 %s153, 1
        %s394 = scalar_lea.sflag [#allocation9], %s393
        %s395 = sand.u32 %s153, 1
        %s396 = smul.addr %s395, 64
        %s397 = scalar_lea.vmem [#allocation8], %s396
        %p398 = pneg %p166
        %p399 = pneg %p163
        %p400 = scmp.lt.s32.totalorder %s34, 1
        %s401 = scalar_select %p400, %s34, 1
        %s402 = scalar_lea.vmem %s5, %s401
        %p403 = pneg %p192
        %p404 = pneg %p189
        %p405 = pneg %p218
        %p406 = pneg %p215
        %s407 = sand.u32 %s205, 1
        %s408 = scalar_lea.sflag [#allocation4], %s407
        %s409 = sand.u32 %s205, 1
        %s410 = smul.addr %s409, 8
        %s411 = scalar_lea.vmem [#allocation10], %s410
        %p412 = scmp.lt.s32.totalorder %s34, 1
        %s413 = scalar_select %p412, %s34, 1
        %s414 = scalar_lea.vmem %s2, %s413
        %p415 = scmp.lt.s32.totalorder %s34, 1
        %s416 = scalar_select %p415, %s34, 1
        %s417 = scalar_lea.vmem %s5, %s416
        %p419 = scmp.eq.s32.totalorder %s34, 0
        // Predicated region
        $region61: #{tpu_custom_call.1} parent=43 // pred_check
          %p420 = pneg %p419
        $region62: #{tpu_custom_call.1} parent=43 // pred_check_branch
          %422 = sbr.rel (%p420) target = $region64
        $region63: #{tpu_custom_call.1} parent=43 // pred_region
          %v423 = vld [vmem:[%s337] sm:$0xff]
          %424 = vst [vmem:[%s411] sm:$0xff] %v423
        $region64: #{tpu_custom_call.1} parent=43 // pred_fallthru
          _
        %v425 = vld [vmem:[%s411] sm:$0xff]
        %426 = vadd.xlane.f32.xlu0 %v425
        %v427 = vpop.xlane.xlu0 %426
        %v428 = vrcp.pop 128.0
        %v429 = vmul.f32 %v427, %v428
        %v430 = vsub.f32 %v425, %v429
        %v431 = vmul.f32 %v430, %v430
        %432 = vadd.xlane.f32.xlu0 %v431
        %v433 = vpop.xlane.xlu0 %432
        %v434 = vmul.f32 %v433, %v428
        %v435 = vadd.f32 %v434, 1e-05
        %v436 = vrsqrt.pop %v435
        %v437 = vmul.f32 %v430, %v436
        %v438 = vld [vmem:[%s345] sm:$0x1]
        %v440 = vlaneseq
        %v441 = vshrl.u32 %v440, 7
        %v442 = vsub.s32 0, %v441
        %v443 = vrot.slane %v438, %v442
        %v445 = vmul.f32 %v437, %v443
        %v446 = vld [vmem:[%s414] sm:$0x1]
        %v448 = vlaneseq
        %v449 = vshrl.u32 %v448, 7
        %v450 = vsub.s32 0, %v449
        %v451 = vrot.slane %v446, %v450
        %v453 = vadd.f32 %v445, %v451
        %v454 = vpack.c.bf16 %v453, %v453
        %v455 = vld [vmem:[%s354] sm:$0xff]
        %v456 = vld [vmem:[%s354 + $0x8] sm:$0xf]
        %v457 = vld [vmem:[%s354 + $0xc] sm:$0xff]
        %v458 = vld [vmem:[%s354 + $0x14] sm:$0xf]
        %v459 = vld [vmem:[%s354 + $0x18] sm:$0xff]
        %v460 = vld [vmem:[%s354 + $0x20] sm:$0xf]
        %v461 = vld [vmem:[%s354 + $0x24] sm:$0xff]
        %v462 = vld [vmem:[%s354 + $0x2c] sm:$0xf]
        %v463 = vld [vmem:[%s354 + $0x30] sm:$0xff]
        %v464 = vld [vmem:[%s354 + $0x38] sm:$0xf]
        %v465 = vld [vmem:[%s354 + $0x3c] sm:$0xff]
        %v466 = vld [vmem:[%s354 + $0x44] sm:$0xf]
        %v467 = vld [vmem:[%s354 + $0x48] sm:$0xff]
        %v468 = vld [vmem:[%s354 + $0x50] sm:$0xf]
        %v469 = vld [vmem:[%s354 + $0x54] sm:$0xff]
        %v470 = vld [vmem:[%s354 + $0x5c] sm:$0xf]
        %v471 = vld [vmem:[%s354 + $0x60] sm:$0xff]
        %v472 = vld [vmem:[%s354 + $0x68] sm:$0xf]
        %v473 = vld [vmem:[%s354 + $0x6c] sm:$0xff]
        %v474 = vld [vmem:[%s354 + $0x74] sm:$0xf]
        %v475 = vld [vmem:[%s354 + $0x78] sm:$0xff]
        %v476 = vld [vmem:[%s354 + $0x80] sm:$0xf]
        %v477 = vld [vmem:[%s354 + $0x84] sm:$0xff]
        %v478 = vld [vmem:[%s354 + $0x8c] sm:$0xf]
        %v479 = vld [vmem:[%s354 + $0x90] sm:$0xff]
        %v480 = vld [vmem:[%s354 + $0x98] sm:$0xf]
        %v481 = vld [vmem:[%s354 + $0x9c] sm:$0xff]
        %v482 = vld [vmem:[%s354 + $0xa4] sm:$0xf]
        %v483 = vld [vmem:[%s354 + $0xa8] sm:$0xff]
        %v484 = vld [vmem:[%s354 + $0xb0] sm:$0xf]
        %v485 = vld [vmem:[%s354 + $0xb4] sm:$0xff]
        %v486 = vld [vmem:[%s354 + $0xbc] sm:$0xf]
        %v519 = vunpack.c.l.b16 %v455
        %v520 = vunpack.c.h.b16 %v455
        %v521 = vunpack.c.l.b16 %v456
        %v522 = vunpack.c.l.b16 %v457
        %v523 = vunpack.c.h.b16 %v457
        %v524 = vunpack.c.l.b16 %v458
        %v525 = vunpack.c.l.b16 %v459
        %v526 = vunpack.c.h.b16 %v459
        %v527 = vunpack.c.l.b16 %v460
        %v528 = vunpack.c.l.b16 %v461
        %v529 = vunpack.c.h.b16 %v461
        %v530 = vunpack.c.l.b16 %v462
        %v531 = vunpack.c.l.b16 %v463
        %v532 = vunpack.c.h.b16 %v463
        %v533 = vunpack.c.l.b16 %v464
        %v534 = vunpack.c.l.b16 %v465
        %v535 = vunpack.c.h.b16 %v465
        %v536 = vunpack.c.l.b16 %v466
        %v537 = vunpack.c.l.b16 %v467
        %v538 = vunpack.c.h.b16 %v467
        %v539 = vunpack.c.l.b16 %v468
        %v540 = vunpack.c.l.b16 %v469
        %v541 = vunpack.c.h.b16 %v469
        %v542 = vunpack.c.l.b16 %v470
        %v543 = vunpack.c.l.b16 %v471
        %v544 = vunpack.c.h.b16 %v471
        %v545 = vunpack.c.l.b16 %v472
        %v546 = vunpack.c.l.b16 %v473
        %v547 = vunpack.c.h.b16 %v473
        %v548 = vunpack.c.l.b16 %v474
        %v549 = vunpack.c.l.b16 %v475
        %v550 = vunpack.c.h.b16 %v475
        %v551 = vunpack.c.l.b16 %v476
        %v552 = vunpack.c.l.b16 %v477
        %v553 = vunpack.c.h.b16 %v477
        %v554 = vunpack.c.l.b16 %v478
        %v555 = vunpack.c.l.b16 %v479
        %v556 = vunpack.c.h.b16 %v479
        %v557 = vunpack.c.l.b16 %v480
        %v558 = vunpack.c.l.b16 %v481
        %v559 = vunpack.c.h.b16 %v481
        %v560 = vunpack.c.l.b16 %v482
        %v561 = vunpack.c.l.b16 %v483
        %v562 = vunpack.c.h.b16 %v483
        %v563 = vunpack.c.l.b16 %v484
        %v564 = vunpack.c.l.b16 %v485
        %v565 = vunpack.c.h.b16 %v485
        %v566 = vunpack.c.l.b16 %v486
        %v567 = vpack.c.b16 %v522, %v519
        %v568 = vpack.c.b16 %v523, %v520
        %v569 = vpack.c.b16 %v524, %v521
        %v570 = vpack.c.b16 %v528, %v525
        %v571 = vpack.c.b16 %v529, %v526
        %v572 = vpack.c.b16 %v530, %v527
        %v573 = vpack.c.b16 %v534, %v531
        %v574 = vpack.c.b16 %v535, %v532
        %v575 = vpack.c.b16 %v536, %v533
        %v576 = vpack.c.b16 %v540, %v537
        %v577 = vpack.c.b16 %v541, %v538
        %v578 = vpack.c.b16 %v542, %v539
        %v579 = vpack.c.b16 %v546, %v543
        %v580 = vpack.c.b16 %v547, %v544
        %v581 = vpack.c.b16 %v548, %v545
        %v582 = vpack.c.b16 %v552, %v549
        %v583 = vpack.c.b16 %v553, %v550
        %v584 = vpack.c.b16 %v554, %v551
        %v585 = vpack.c.b16 %v558, %v555
        %v586 = vpack.c.b16 %v559, %v556
        %v587 = vpack.c.b16 %v560, %v557
        %v588 = vpack.c.b16 %v564, %v561
        %v589 = vpack.c.b16 %v565, %v562
        %v590 = vpack.c.b16 %v566, %v563
        %615 = vmatprep.subr.bf16.mxu0 %v589
        %616 = vmatpush1.bf16.msra.mxu0 %v588
        %617 = vmatprep.subr.bf16.mxu0 %v586
        %618 = vmatpush1.bf16.msra.mxu0 %v585
        %619 = vmatprep.subr.bf16.mxu0 %v583
        %620 = vmatpush1.bf16.msra.mxu0 %v582
        %621 = vmatprep.subr.bf16.mxu0 %v580
        %622 = vmatpush1.bf16.msra.mxu0 %v579
        %623 = vmatprep.subr.bf16.mxu0 %v577
        %624 = vmatpush1.bf16.msra.mxu0 %v576
        %625 = vmatprep.subr.bf16.mxu0 %v574
        %626 = vmatpush1.bf16.msra.mxu0 %v573
        %627 = vmatprep.subr.bf16.mxu0 %v571
        %628 = vmatpush1.bf16.msra.mxu0 %v570
        %629 = vmatprep.subr.bf16.mxu0 %v568
        %630 = vmatpush1.bf16.msra.mxu0 %v567
        %631 = vmatprep.subr.bf16.mxu0 0
        %632 = vmatpush2.bf16.msra.mxu0 0
        %633 = vmatprep.subr.bf16.mxu0 0
        %634 = vmatpush2.bf16.msra.mxu0 0
        %635 = vmatprep.subr.bf16.mxu0 0
        %636 = vmatpush2.bf16.msra.mxu0 0
        %637 = vmatprep.subr.bf16.mxu0 0
        %638 = vmatpush2.bf16.msra.mxu0 0
        %639 = vmatprep.subr.bf16.mxu0 0
        %640 = vmatpush2.bf16.msra.mxu0 0
        %641 = vmatprep.subr.bf16.mxu0 0
        %642 = vmatpush2.bf16.msra.mxu0 0
        %643 = vmatprep.subr.bf16.mxu0 0
        %644 = vmatpush2.bf16.msra.mxu0 0
        %645 = vmatprep.subr.bf16.mxu0 0
        %646 = vmatpush2.bf16.msra.mxu0 0
        %647 = vmatprep.mubr.bf16.mxu0 0
        %648 = vmatmul.mubr.bf16.gmra.mxu0 %v454
        %v649 = vpop.f32.mrf.mxu0
        %v650 = vadd.f32 0.0, %v649
        %v651 = vpop.f32.mrf.mxu0
        %v652 = vadd.f32 0.0, %v651
        %v653 = vpop.f32.mrf.mxu0
        %v654 = vpop.f32.mrf.mxu0
        %655 = vdwg.mxu0
        %656 = vmatprep.subr.bf16.mxu0 0
        %657 = vmatpush1.bf16.msra.mxu0 %v590
        %658 = vmatprep.subr.bf16.mxu0 0
        %659 = vmatpush1.bf16.msra.mxu0 %v587
        %660 = vmatprep.subr.bf16.mxu0 0
        %661 = vmatpush1.bf16.msra.mxu0 %v584
        %662 = vmatprep.subr.bf16.mxu0 0
        %663 = vmatpush1.bf16.msra.mxu0 %v581
        %664 = vmatprep.subr.bf16.mxu0 0
        %665 = vmatpush1.bf16.msra.mxu0 %v578
        %666 = vmatprep.subr.bf16.mxu0 0
        %667 = vmatpush1.bf16.msra.mxu0 %v575
        %668 = vmatprep.subr.bf16.mxu0 0
        %669 = vmatpush1.bf16.msra.mxu0 %v572
        %670 = vmatprep.subr.bf16.mxu0 0
        %671 = vmatpush1.bf16.msra.mxu0 %v569
        %672 = vmatprep.subr.bf16.mxu0 0
        %673 = vmatpush2.bf16.msra.mxu0 0
        %674 = vmatprep.subr.bf16.mxu0 0
        %675 = vmatpush2.bf16.msra.mxu0 0
        %676 = vmatprep.subr.bf16.mxu0 0
        %677 = vmatpush2.bf16.msra.mxu0 0
        %678 = vmatprep.subr.bf16.mxu0 0
        %679 = vmatpush2.bf16.msra.mxu0 0
        %680 = vmatprep.subr.bf16.mxu0 0
        %681 = vmatpush2.bf16.msra.mxu0 0
        %682 = vmatprep.subr.bf16.mxu0 0
        %683 = vmatpush2.bf16.msra.mxu0 0
        %684 = vmatprep.subr.bf16.mxu0 0
        %685 = vmatpush2.bf16.msra.mxu0 0
        %686 = vmatprep.subr.bf16.mxu0 0
        %687 = vmatpush2.bf16.msra.mxu0 0
        %688 = vmatprep.mubr.bf16.mxu0 0
        %689 = vmatmul.mubr.bf16.gmra.mxu0 %v454
        %v690 = vpop.f32.mrf.mxu0
        %v691 = vadd.f32 0.0, %v690
        %v692 = vpop.f32.mrf.mxu0
        %v693 = vpop.f32.mrf.mxu0
        %v694 = vpop.f32.mrf.mxu0
        %695 = vdwg.mxu0
        %v696 = vmul.f32 %v650, 0.25
        %v697 = vpack.c.bf16 %v696, %v696
        %v698 = vpack.c.bf16 %v652, %v652
        %v699 = vpack.c.bf16 %v691, %v691
        %v700 = vld [vmem:[%s363] sm:$0xf]
        %v701 = vld [vmem:[%s363 + $0x4] sm:$0xf]
        %v702 = vld [vmem:[%s363 + $0x8] sm:$0xf]
        %v703 = vld [vmem:[%s363 + $0xc] sm:$0xf]
        %v704 = vld [vmem:[%s363 + $0x10] sm:$0xf]
        %v705 = vld [vmem:[%s363 + $0x14] sm:$0xf]
        %v706 = vld [vmem:[%s363 + $0x18] sm:$0xf]
        %v707 = vld [vmem:[%s363 + $0x1c] sm:$0xf]
        %v708 = vld [vmem:[%s363 + $0x20] sm:$0xf]
        %v709 = vld [vmem:[%s363 + $0x24] sm:$0xf]
        %v710 = vld [vmem:[%s363 + $0x28] sm:$0xf]
        %v711 = vld [vmem:[%s363 + $0x2c] sm:$0xf]
        %v712 = vld [vmem:[%s363 + $0x30] sm:$0xf]
        %v713 = vld [vmem:[%s363 + $0x34] sm:$0xf]
        %v714 = vld [vmem:[%s363 + $0x38] sm:$0xf]
        %v715 = vld [vmem:[%s363 + $0x3c] sm:$0xf]
        %vm716 = vcmask 130048
        %v718 = vsel %vm716, %v697, 0
        %v721 = vsel %vm716, %v698, 0
        %723 = vmatprep.subr.bf16.mxu0 0
        %724 = vmatpush1.bf16.xpose.msra.mxu0 0
        %725 = vmatprep.subr.bf16.mxu0 0
        %726 = vmatpush1.bf16.xpose.msra.mxu0 0
        %727 = vmatprep.subr.bf16.mxu0 0
        %728 = vmatpush1.bf16.xpose.msra.mxu0 0
        %729 = vmatprep.subr.bf16.mxu0 0
        %730 = vmatpush1.bf16.xpose.msra.mxu0 0
        %731 = vmatprep.subr.bf16.mxu0 0
        %732 = vmatpush1.bf16.xpose.msra.mxu0 0
        %733 = vmatprep.subr.bf16.mxu0 0
        %734 = vmatpush1.bf16.xpose.msra.mxu0 0
        %735 = vmatprep.subr.bf16.mxu0 0
        %736 = vmatpush1.bf16.xpose.msra.mxu0 0
        %737 = vmatprep.subr.bf16.mxu0 0
        %738 = vmatpush1.bf16.xpose.msra.mxu0 %v721
        %739 = vmatprep.subr.bf16.mxu0 0
        %740 = vmatpush2.bf16.xpose.msra.mxu0 0
        %741 = vmatprep.subr.bf16.mxu0 0
        %742 = vmatpush2.bf16.xpose.msra.mxu0 0
        %743 = vmatprep.subr.bf16.mxu0 0
        %744 = vmatpush2.bf16.xpose.msra.mxu0 0
        %745 = vmatprep.subr.bf16.mxu0 0
        %746 = vmatpush2.bf16.xpose.msra.mxu0 0
        %747 = vmatprep.subr.bf16.mxu0 0
        %748 = vmatpush2.bf16.xpose.msra.mxu0 0
        %749 = vmatprep.subr.bf16.mxu0 0
        %750 = vmatpush2.bf16.xpose.msra.mxu0 0
        %751 = vmatprep.subr.bf16.mxu0 0
        %752 = vmatpush2.bf16.xpose.msra.mxu0 0
        %753 = vmatprep.subr.bf16.mxu0 0
        %754 = vmatpush2.bf16.xpose.msra.mxu0 0
        %755 = vmatprep.mubr.bf16.mxu0 0
        %756 = vmatmul.mubr.bf16.gmra.mxu0 %v718
        %v757 = vpop.f32.mrf.mxu0
        %v758 = vadd.f32 0.0, %v757
        %v759 = vpop.f32.mrf.mxu0
        %v760 = vpop.f32.mrf.mxu0
        %v761 = vpop.f32.mrf.mxu0
        %762 = vdwg.mxu0
        %vm763 = vcmask 64512
        %v764 = vsel %vm763, %v758, -inf
        %765 = vmax.xlane.f32.xlu0 %v764
        %v766 = vpop.xlane.xlu0 %765
        %v767 = vsub.f32 %v758, %v766
        %v768 = vmul.f32 %v767, 1.442695
        %v769 = vpow.pop %v768
        %v770 = vsel %vm763, %v769, 0.0
        %771 = vadd.xlane.f32.xlu0 %v770
        %v772 = vpop.xlane.xlu0 %771
        %v773 = vrcp.pop %v772
        %v774 = vmul.f32 %v769, %v773
        %v775 = vpack.c.bf16 %v774, %v774
        %v777 = vsel %vm763, %v775, 0
        %vm779 = vcmask 1043456
        %v781 = vsel %vm779, %v699, 0
        %783 = vmatprep.subr.bf16.mxu0 0
        %784 = vmatpush1.bf16.msra.mxu0 0
        %785 = vmatprep.subr.bf16.mxu0 0
        %786 = vmatpush1.bf16.msra.mxu0 0
        %787 = vmatprep.subr.bf16.mxu0 0
        %788 = vmatpush1.bf16.msra.mxu0 0
        %789 = vmatprep.subr.bf16.mxu0 0
        %790 = vmatpush1.bf16.msra.mxu0 0
        %791 = vmatprep.subr.bf16.mxu0 0
        %792 = vmatpush1.bf16.msra.mxu0 0
        %793 = vmatprep.subr.bf16.mxu0 0
        %794 = vmatpush1.bf16.msra.mxu0 0
        %795 = vmatprep.subr.bf16.mxu0 0
        %796 = vmatpush1.bf16.msra.mxu0 0
        %797 = vmatprep.subr.bf16.mxu0 0
        %798 = vmatpush1.bf16.msra.mxu0 %v781
        %799 = vmatprep.subr.bf16.mxu0 0
        %800 = vmatpush2.bf16.msra.mxu0 0
        %801 = vmatprep.subr.bf16.mxu0 0
        %802 = vmatpush2.bf16.msra.mxu0 0
        %803 = vmatprep.subr.bf16.mxu0 0
        %804 = vmatpush2.bf16.msra.mxu0 0
        %805 = vmatprep.subr.bf16.mxu0 0
        %806 = vmatpush2.bf16.msra.mxu0 0
        %807 = vmatprep.subr.bf16.mxu0 0
        %808 = vmatpush2.bf16.msra.mxu0 0
        %809 = vmatprep.subr.bf16.mxu0 0
        %810 = vmatpush2.bf16.msra.mxu0 0
        %811 = vmatprep.subr.bf16.mxu0 0
        %812 = vmatpush2.bf16.msra.mxu0 0
        %813 = vmatprep.subr.bf16.mxu0 0
        %814 = vmatpush2.bf16.msra.mxu0 0
        %815 = vmatprep.mubr.bf16.mxu0 0
        %816 = vmatmul.mubr.bf16.gmra.mxu0 %v777
        %v817 = vpop.f32.mrf.mxu0
        %v818 = vadd.f32 0.0, %v817
        %v819 = vpop.f32.mrf.mxu0
        %v820 = vpop.f32.mrf.mxu0
        %v821 = vpop.f32.mrf.mxu0
        %822 = vdwg.mxu0
        %v823 = vpack.c.bf16 %v818, %v818
        %825 = vrot.lane.b32.xlu0 %v697, 112
        %v826 = vpop.permute.xlu0 %825
        %828 = vrot.lane.b32.xlu0 %v698, 112
        %v829 = vpop.permute.xlu0 %828
        %v831 = vsel %vm716, %v826, 0
        %v834 = vsel %vm716, %v829, 0
        %836 = vmatprep.subr.bf16.mxu0 0
        %837 = vmatpush1.bf16.xpose.msra.mxu0 0
        %838 = vmatprep.subr.bf16.mxu0 0
        %839 = vmatpush1.bf16.xpose.msra.mxu0 0
        %840 = vmatprep.subr.bf16.mxu0 0
        %841 = vmatpush1.bf16.xpose.msra.mxu0 0
        %842 = vmatprep.subr.bf16.mxu0 0
        %843 = vmatpush1.bf16.xpose.msra.mxu0 0
        %844 = vmatprep.subr.bf16.mxu0 0
        %845 = vmatpush1.bf16.xpose.msra.mxu0 0
        %846 = vmatprep.subr.bf16.mxu0 0
        %847 = vmatpush1.bf16.xpose.msra.mxu0 0
        %848 = vmatprep.subr.bf16.mxu0 0
        %849 = vmatpush1.bf16.xpose.msra.mxu0 0
        %850 = vmatprep.subr.bf16.mxu0 0
        %851 = vmatpush1.bf16.xpose.msra.mxu0 %v834
        %852 = vmatprep.subr.bf16.mxu0 0
        %853 = vmatpush2.bf16.xpose.msra.mxu0 0
        %854 = vmatprep.subr.bf16.mxu0 0
        %855 = vmatpush2.bf16.xpose.msra.mxu0 0
        %856 = vmatprep.subr.bf16.mxu0 0
        %857 = vmatpush2.bf16.xpose.msra.mxu0 0
        %858 = vmatprep.subr.bf16.mxu0 0
        %859 = vmatpush2.bf16.xpose.msra.mxu0 0
        %860 = vmatprep.subr.bf16.mxu0 0
        %861 = vmatpush2.bf16.xpose.msra.mxu0 0
        %862 = vmatprep.subr.bf16.mxu0 0
        %863 = vmatpush2.bf16.xpose.msra.mxu0 0
        %864 = vmatprep.subr.bf16.mxu0 0
        %865 = vmatpush2.bf16.xpose.msra.mxu0 0
        %866 = vmatprep.subr.bf16.mxu0 0
        %867 = vmatpush2.bf16.xpose.msra.mxu0 0
        %868 = vmatprep.mubr.bf16.mxu0 0
        %869 = vmatmul.mubr.bf16.gmra.mxu0 %v831
        %v870 = vpop.f32.mrf.mxu0
        %v871 = vadd.f32 0.0, %v870
        %v872 = vpop.f32.mrf.mxu0
        %v873 = vpop.f32.mrf.mxu0
        %v874 = vpop.f32.mrf.mxu0
        %875 = vdwg.mxu0
        %v876 = vsel %vm763, %v871, -inf
        %877 = vmax.xlane.f32.xlu0 %v876
        %v878 = vpop.xlane.xlu0 %877
        %v879 = vsub.f32 %v871, %v878
        %v880 = vmul.f32 %v879, 1.442695
        %v881 = vpow.pop %v880
        %v882 = vsel %vm763, %v881, 0.0
        %883 = vadd.xlane.f32.xlu0 %v882
        %v884 = vpop.xlane.xlu0 %883
        %v885 = vrcp.pop %v884
        %v886 = vmul.f32 %v881, %v885
        %v887 = vpack.c.bf16 %v886, %v886
        %889 = vrot.lane.b32.xlu0 %v699, 112
        %v890 = vpop.permute.xlu0 %889
        %v892 = vsel %vm763, %v887, 0
        %v895 = vsel %vm779, %v890, 0
        %897 = vmatprep.subr.bf16.mxu0 0
        %898 = vmatpush1.bf16.msra.mxu0 0
        %899 = vmatprep.subr.bf16.mxu0 0
        %900 = vmatpush1.bf16.msra.mxu0 0
        %901 = vmatprep.subr.bf16.mxu0 0
        %902 = vmatpush1.bf16.msra.mxu0 0
        %903 = vmatprep.subr.bf16.mxu0 0
        %904 = vmatpush1.bf16.msra.mxu0 0
        %905 = vmatprep.subr.bf16.mxu0 0
        %906 = vmatpush1.bf16.msra.mxu0 0
        %907 = vmatprep.subr.bf16.mxu0 0
        %908 = vmatpush1.bf16.msra.mxu0 0
        %909 = vmatprep.subr.bf16.mxu0 0
        %910 = vmatpush1.bf16.msra.mxu0 0
        %911 = vmatprep.subr.bf16.mxu0 0
        %912 = vmatpush1.bf16.msra.mxu0 %v895
        %913 = vmatprep.subr.bf16.mxu0 0
        %914 = vmatpush2.bf16.msra.mxu0 0
        %915 = vmatprep.subr.bf16.mxu0 0
        %916 = vmatpush2.bf16.msra.mxu0 0
        %917 = vmatprep.subr.bf16.mxu0 0
        %918 = vmatpush2.bf16.msra.mxu0 0
        %919 = vmatprep.subr.bf16.mxu0 0
        %920 = vmatpush2.bf16.msra.mxu0 0
        %921 = vmatprep.subr.bf16.mxu0 0
        %922 = vmatpush2.bf16.msra.mxu0 0
        %923 = vmatprep.subr.bf16.mxu0 0
        %924 = vmatpush2.bf16.msra.mxu0 0
        %925 = vmatprep.subr.bf16.mxu0 0
        %926 = vmatpush2.bf16.msra.mxu0 0
        %927 = vmatprep.subr.bf16.mxu0 0
        %928 = vmatpush2.bf16.msra.mxu0 0
        %929 = vmatprep.mubr.bf16.mxu0 0
        %930 = vmatmul.mubr.bf16.gmra.mxu0 %v892
        %v931 = vpop.f32.mrf.mxu0
        %v932 = vadd.f32 0.0, %v931
        %v933 = vpop.f32.mrf.mxu0
        %v934 = vpop.f32.mrf.mxu0
        %v935 = vpop.f32.mrf.mxu0
        %936 = vdwg.mxu0
        %v937 = vpack.c.bf16 %v932, %v932
        %v940 = vunpack.c.l.b16 %v702
        %v941 = vunpack.c.l.b16 %v703
        %v942 = vpack.c.b16 %v941, %v940
        %v945 = vsel %vm716, %v937, 0
        %947 = vmatprep.subr.bf16.mxu0 0
        %948 = vmatpush1.bf16.msra.mxu0 0
        %949 = vmatprep.subr.bf16.mxu0 0
        %950 = vmatpush1.bf16.msra.mxu0 0
        %951 = vmatprep.subr.bf16.mxu0 0
        %952 = vmatpush1.bf16.msra.mxu0 0
        %953 = vmatprep.subr.bf16.mxu0 0
        %954 = vmatpush1.bf16.msra.mxu0 0
        %955 = vmatprep.subr.bf16.mxu0 0
        %956 = vmatpush1.bf16.msra.mxu0 0
        %957 = vmatprep.subr.bf16.mxu0 0
        %958 = vmatpush1.bf16.msra.mxu0 0
        %959 = vmatprep.subr.bf16.mxu0 0
        %960 = vmatpush1.bf16.msra.mxu0 0
        %961 = vmatprep.subr.bf16.mxu0 0
        %962 = vmatpush1.bf16.msra.mxu0 %v942
        %963 = vmatprep.subr.bf16.mxu0 0
        %964 = vmatpush2.bf16.msra.mxu0 0
        %965 = vmatprep.subr.bf16.mxu0 0
        %966 = vmatpush2.bf16.msra.mxu0 0
        %967 = vmatprep.subr.bf16.mxu0 0
        %968 = vmatpush2.bf16.msra.mxu0 0
        %969 = vmatprep.subr.bf16.mxu0 0
        %970 = vmatpush2.bf16.msra.mxu0 0
        %971 = vmatprep.subr.bf16.mxu0 0
        %972 = vmatpush2.bf16.msra.mxu0 0
        %973 = vmatprep.subr.bf16.mxu0 0
        %974 = vmatpush2.bf16.msra.mxu0 0
        %975 = vmatprep.subr.bf16.mxu0 0
        %976 = vmatpush2.bf16.msra.mxu0 0
        %977 = vmatprep.subr.bf16.mxu0 0
        %978 = vmatpush2.bf16.msra.mxu0 0
        %979 = vmatprep.mubr.bf16.mxu0 0
        %980 = vmatmul.mubr.bf16.gmra.mxu0 %v945
        %v981 = vpop.f32.mrf.mxu0
        %v982 = vadd.f32 0.0, %v981
        %v983 = vpop.f32.mrf.mxu0
        %v984 = vpop.f32.mrf.mxu0
        %v985 = vpop.f32.mrf.mxu0
        %986 = vdwg.mxu0
        %v989 = vunpack.c.l.b16 %v700
        %v990 = vunpack.c.l.b16 %v701
        %v991 = vpack.c.b16 %v990, %v989
        %v994 = vsel %vm716, %v823, 0
        %996 = vmatprep.subr.bf16.mxu0 0
        %997 = vmatpush1.bf16.msra.mxu0 0
        %998 = vmatprep.subr.bf16.mxu0 0
        %999 = vmatpush1.bf16.msra.mxu0 0
        %1000 = vmatprep.subr.bf16.mxu0 0
        %1001 = vmatpush1.bf16.msra.mxu0 0
        %1002 = vmatprep.subr.bf16.mxu0 0
        %1003 = vmatpush1.bf16.msra.mxu0 0
        %1004 = vmatprep.subr.bf16.mxu0 0
        %1005 = vmatpush1.bf16.msra.mxu0 0
        %1006 = vmatprep.subr.bf16.mxu0 0
        %1007 = vmatpush1.bf16.msra.mxu0 0
        %1008 = vmatprep.subr.bf16.mxu0 0
        %1009 = vmatpush1.bf16.msra.mxu0 0
        %1010 = vmatprep.subr.bf16.mxu0 0
        %1011 = vmatpush1.bf16.msra.mxu0 %v991
        %1012 = vmatprep.subr.bf16.mxu0 0
        %1013 = vmatpush2.bf16.msra.mxu0 0
        %1014 = vmatprep.subr.bf16.mxu0 0
        %1015 = vmatpush2.bf16.msra.mxu0 0
        %1016 = vmatprep.subr.bf16.mxu0 0
        %1017 = vmatpush2.bf16.msra.mxu0 0
        %1018 = vmatprep.subr.bf16.mxu0 0
        %1019 = vmatpush2.bf16.msra.mxu0 0
        %1020 = vmatprep.subr.bf16.mxu0 0
        %1021 = vmatpush2.bf16.msra.mxu0 0
        %1022 = vmatprep.subr.bf16.mxu0 0
        %1023 = vmatpush2.bf16.msra.mxu0 0
        %1024 = vmatprep.subr.bf16.mxu0 0
        %1025 = vmatpush2.bf16.msra.mxu0 0
        %1026 = vmatprep.subr.bf16.mxu0 0
        %1027 = vmatpush2.bf16.msra.mxu0 0
        %1028 = vmatprep.mubr.bf16.mxu0 0
        %1029 = vmatmul.mubr.bf16.gmra.mxu0 %v994
        %v1030 = vpop.f32.mrf.mxu0
        %v1031 = vadd.f32 %v982, %v1030
        %v1032 = vpop.f32.mrf.mxu0
        %v1033 = vpop.f32.mrf.mxu0
        %v1034 = vpop.f32.mrf.mxu0
        %1035 = vdwg.mxu0
        %1036 = vrot.lane.b32.xlu0 %v697, 96
        %v1037 = vpop.permute.xlu0 %1036
        %1038 = vrot.lane.b32.xlu0 %v698, 96
        %v1039 = vpop.permute.xlu0 %1038
        %v1041 = vsel %vm716, %v1037, 0
        %v1044 = vsel %vm716, %v1039, 0
        %1046 = vmatprep.subr.bf16.mxu0 0
        %1047 = vmatpush1.bf16.xpose.msra.mxu0 0
        %1048 = vmatprep.subr.bf16.mxu0 0
        %1049 = vmatpush1.bf16.xpose.msra.mxu0 0
        %1050 = vmatprep.subr.bf16.mxu0 0
        %1051 = vmatpush1.bf16.xpose.msra.mxu0 0
        %1052 = vmatprep.subr.bf16.mxu0 0
        %1053 = vmatpush1.bf16.xpose.msra.mxu0 0
        %1054 = vmatprep.subr.bf16.mxu0 0
        %1055 = vmatpush1.bf16.xpose.msra.mxu0 0
        %1056 = vmatprep.subr.bf16.mxu0 0
        %1057 = vmatpush1.bf16.xpose.msra.mxu0 0
        %1058 = vmatprep.subr.bf16.mxu0 0
        %1059 = vmatpush1.bf16.xpose.msra.mxu0 0
        %1060 = vmatprep.subr.bf16.mxu0 0
        %1061 = vmatpush1.bf16.xpose.msra.mxu0 %v1044
        %1062 = vmatprep.subr.bf16.mxu0 0
        %1063 = vmatpush2.bf16.xpose.msra.mxu0 0
        %1064 = vmatprep.subr.bf16.mxu0 0
        %1065 = vmatpush2.bf16.xpose.msra.mxu0 0
        %1066 = vmatprep.subr.bf16.mxu0 0
        %1067 = vmatpush2.bf16.xpose.msra.mxu0 0
        %1068 = vmatprep.subr.bf16.mxu0 0
        %1069 = vmatpush2.bf16.xpose.msra.mxu0 0
        %1070 = vmatprep.subr.bf16.mxu0 0
        %1071 = vmatpush2.bf16.xpose.msra.mxu0 0
        %1072 = vmatprep.subr.bf16.mxu0 0
        %1073 = vmatpush2.bf16.xpose.msra.mxu0 0
        %1074 = vmatprep.subr.bf16.mxu0 0
        %1075 = vmatpush2.bf16.xpose.msra.mxu0 0
        %1076 = vmatprep.subr.bf16.mxu0 0
        %1077 = vmatpush2.bf16.xpose.msra.mxu0 0
        %1078 = vmatprep.mubr.bf16.mxu0 0
        %1079 = vmatmul.mubr.bf16.gmra.mxu0 %v1041
        %v1080 = vpop.f32.mrf.mxu0
        %v1081 = vadd.f32 0.0, %v1080
        %v1082 = vpop.f32.mrf.mxu0
        %v1083 = vpop.f32.mrf.mxu0
        %v1084 = vpop.f32.mrf.mxu0
        %1085 = vdwg.mxu0
        %v1086 = vsel %vm763, %v1081, -inf
        %1087 = vmax.xlane.f32.xlu0 %v1086
        %v1088 = vpop.xlane.xlu0 %1087
        %v1089 = vsub.f32 %v1081, %v1088
        %v1090 = vmul.f32 %v1089, 1.442695
        %v1091 = vpow.pop %v1090
        %v1092 = vsel %vm763, %v1091, 0.0
        %1093 = vadd.xlane.f32.xlu0 %v1092
        %v1094 = vpop.xlane.xlu0 %1093
        %v1095 = vrcp.pop %v1094
        %v1096 = vmul.f32 %v1091, %v1095
        %v1097 = vpack.c.bf16 %v1096, %v1096
        %1098 = vrot.lane.b32.xlu0 %v699, 96
        %v1099 = vpop.permute.xlu0 %1098
        %v1101 = vsel %vm763, %v1097, 0
        %v1104 = vsel %vm779, %v1099, 0
        %1106 = vmatprep.subr.bf16.mxu0 0
        %1107 = vmatpush1.bf16.msra.mxu0 0
        %1108 = vmatprep.subr.bf16.mxu0 0
        %1109 = vmatpush1.bf16.msra.mxu0 0
        %1110 = vmatprep.subr.bf16.mxu0 0
        %1111 = vmatpush1.bf16.msra.mxu0 0
        %1112 = vmatprep.subr.bf16.mxu0 0
        %1113 = vmatpush1.bf16.msra.mxu0 0
        %1114 = vmatprep.subr.bf16.mxu0 0
        %1115 = vmatpush1.bf16.msra.mxu0 0
        %1116 = vmatprep.subr.bf16.mxu0 0
        %1117 = vmatpush1.bf16.msra.mxu0 0
        %1118 = vmatprep.subr.bf16.mxu0 0
        %1119 = vmatpush1.bf16.msra.mxu0 0
        %1120 = vmatprep.subr.bf16.mxu0 0
        %1121 = vmatpush1.bf16.msra.mxu0 %v1104
        %1122 = vmatprep.subr.bf16.mxu0 0
        %1123 = vmatpush2.bf16.msra.mxu0 0
        %1124 = vmatprep.subr.bf16.mxu0 0
        %1125 = vmatpush2.bf16.msra.mxu0 0
        %1126 = vmatprep.subr.bf16.mxu0 0
        %1127 = vmatpush2.bf16.msra.mxu0 0
        %1128 = vmatprep.subr.bf16.mxu0 0
        %1129 = vmatpush2.bf16.msra.mxu0 0
        %1130 = vmatprep.subr.bf16.mxu0 0
        %1131 = vmatpush2.bf16.msra.mxu0 0
        %1132 = vmatprep.subr.bf16.mxu0 0
        %1133 = vmatpush2.bf16.msra.mxu0 0
        %1134 = vmatprep.subr.bf16.mxu0 0
        %1135 = vmatpush2.bf16.msra.mxu0 0
        %1136 = vmatprep.subr.bf16.mxu0 0
        %1137 = vmatpush2.bf16.msra.mxu0 0
        %1138 = vmatprep.mubr.bf16.mxu0 0
        %1139 = vmatmul.mubr.bf16.gmra.mxu0 %v1101
        %v1140 = vpop.f32.mrf.mxu0
        %v1141 = vadd.f32 0.0, %v1140
        %v1142 = vpop.f32.mrf.mxu0
        %v1143 = vpop.f32.mrf.mxu0
        %v1144 = vpop.f32.mrf.mxu0
        %1145 = vdwg.mxu0
        %v1146 = vpack.c.bf16 %v1141, %v1141
        %v1149 = vunpack.c.l.b16 %v704
        %v1150 = vunpack.c.l.b16 %v705
        %v1151 = vpack.c.b16 %v1150, %v1149
        %v1154 = vsel %vm716, %v1146, 0
        %1156 = vmatprep.subr.bf16.mxu0 0
        %1157 = vmatpush1.bf16.msra.mxu0 0
        %1158 = vmatprep.subr.bf16.mxu0 0
        %1159 = vmatpush1.bf16.msra.mxu0 0
        %1160 = vmatprep.subr.bf16.mxu0 0
        %1161 = vmatpush1.bf16.msra.mxu0 0
        %1162 = vmatprep.subr.bf16.mxu0 0
        %1163 = vmatpush1.bf16.msra.mxu0 0
        %1164 = vmatprep.subr.bf16.mxu0 0
        %1165 = vmatpush1.bf16.msra.mxu0 0
        %1166 = vmatprep.subr.bf16.mxu0 0
        %1167 = vmatpush1.bf16.msra.mxu0 0
        %1168 = vmatprep.subr.bf16.mxu0 0
        %1169 = vmatpush1.bf16.msra.mxu0 0
        %1170 = vmatprep.subr.bf16.mxu0 0
        %1171 = vmatpush1.bf16.msra.mxu0 %v1151
        %1172 = vmatprep.subr.bf16.mxu0 0
        %1173 = vmatpush2.bf16.msra.mxu0 0
        %1174 = vmatprep.subr.bf16.mxu0 0
        %1175 = vmatpush2.bf16.msra.mxu0 0
        %1176 = vmatprep.subr.bf16.mxu0 0
        %1177 = vmatpush2.bf16.msra.mxu0 0
        %1178 = vmatprep.subr.bf16.mxu0 0
        %1179 = vmatpush2.bf16.msra.mxu0 0
        %1180 = vmatprep.subr.bf16.mxu0 0
        %1181 = vmatpush2.bf16.msra.mxu0 0
        %1182 = vmatprep.subr.bf16.mxu0 0
        %1183 = vmatpush2.bf16.msra.mxu0 0
        %1184 = vmatprep.subr.bf16.mxu0 0
        %1185 = vmatpush2.bf16.msra.mxu0 0
        %1186 = vmatprep.subr.bf16.mxu0 0
        %1187 = vmatpush2.bf16.msra.mxu0 0
        %1188 = vmatprep.mubr.bf16.mxu0 0
        %1189 = vmatmul.mubr.bf16.gmra.mxu0 %v1154
        %v1190 = vpop.f32.mrf.mxu0
        %v1191 = vadd.f32 0.0, %v1190
        %v1192 = vpop.f32.mrf.mxu0
        %v1193 = vpop.f32.mrf.mxu0
        %v1194 = vpop.f32.mrf.mxu0
        %1195 = vdwg.mxu0
        %v1196 = vadd.f32 %v1031, %v1191
        %1197 = vrot.lane.b32.xlu0 %v697, 80
        %v1198 = vpop.permute.xlu0 %1197
        %1199 = vrot.lane.b32.xlu0 %v698, 80
        %v1200 = vpop.permute.xlu0 %1199
        %v1202 = vsel %vm716, %v1198, 0
        %v1205 = vsel %vm716, %v1200, 0
        %1207 = vmatprep.subr.bf16.mxu0 0
        %1208 = vmatpush1.bf16.xpose.msra.mxu0 0
        %1209 = vmatprep.subr.bf16.mxu0 0
        %1210 = vmatpush1.bf16.xpose.msra.mxu0 0
        %1211 = vmatprep.subr.bf16.mxu0 0
        %1212 = vmatpush1.bf16.xpose.msra.mxu0 0
        %1213 = vmatprep.subr.bf16.mxu0 0
        %1214 = vmatpush1.bf16.xpose.msra.mxu0 0
        %1215 = vmatprep.subr.bf16.mxu0 0
        %1216 = vmatpush1.bf16.xpose.msra.mxu0 0
        %1217 = vmatprep.subr.bf16.mxu0 0
        %1218 = vmatpush1.bf16.xpose.msra.mxu0 0
        %1219 = vmatprep.subr.bf16.mxu0 0
        %1220 = vmatpush1.bf16.xpose.msra.mxu0 0
        %1221 = vmatprep.subr.bf16.mxu0 0
        %1222 = vmatpush1.bf16.xpose.msra.mxu0 %v1205
        %1223 = vmatprep.subr.bf16.mxu0 0
        %1224 = vmatpush2.bf16.xpose.msra.mxu0 0
        %1225 = vmatprep.subr.bf16.mxu0 0
        %1226 = vmatpush2.bf16.xpose.msra.mxu0 0
        %1227 = vmatprep.subr.bf16.mxu0 0
        %1228 = vmatpush2.bf16.xpose.msra.mxu0 0
        %1229 = vmatprep.subr.bf16.mxu0 0
        %1230 = vmatpush2.bf16.xpose.msra.mxu0 0
        %1231 = vmatprep.subr.bf16.mxu0 0
        %1232 = vmatpush2.bf16.xpose.msra.mxu0 0
        %1233 = vmatprep.subr.bf16.mxu0 0
        %1234 = vmatpush2.bf16.xpose.msra.mxu0 0
        %1235 = vmatprep.subr.bf16.mxu0 0
        %1236 = vmatpush2.bf16.xpose.msra.mxu0 0
        %1237 = vmatprep.subr.bf16.mxu0 0
        %1238 = vmatpush2.bf16.xpose.msra.mxu0 0
        %1239 = vmatprep.mubr.bf16.mxu0 0
        %1240 = vmatmul.mubr.bf16.gmra.mxu0 %v1202
        %v1241 = vpop.f32.mrf.mxu0
        %v1242 = vadd.f32 0.0, %v1241
        %v1243 = vpop.f32.mrf.mxu0
        %v1244 = vpop.f32.mrf.mxu0
        %v1245 = vpop.f32.mrf.mxu0
        %1246 = vdwg.mxu0
        %v1247 = vsel %vm763, %v1242, -inf
        %1248 = vmax.xlane.f32.xlu0 %v1247
        %v1249 = vpop.xlane.xlu0 %1248
        %v1250 = vsub.f32 %v1242, %v1249
        %v1251 = vmul.f32 %v1250, 1.442695
        %v1252 = vpow.pop %v1251
        %v1253 = vsel %vm763, %v1252, 0.0
        %1254 = vadd.xlane.f32.xlu0 %v1253
        %v1255 = vpop.xlane.xlu0 %1254
        %v1256 = vrcp.pop %v1255
        %v1257 = vmul.f32 %v1252, %v1256
        %v1258 = vpack.c.bf16 %v1257, %v1257
        %1259 = vrot.lane.b32.xlu0 %v699, 80
        %v1260 = vpop.permute.xlu0 %1259
        %v1262 = vsel %vm763, %v1258, 0
        %v1265 = vsel %vm779, %v1260, 0
        %1267 = vmatprep.subr.bf16.mxu0 0
        %1268 = vmatpush1.bf16.msra.mxu0 0
        %1269 = vmatprep.subr.bf16.mxu0 0
        %1270 = vmatpush1.bf16.msra.mxu0 0
        %1271 = vmatprep.subr.bf16.mxu0 0
        %1272 = vmatpush1.bf16.msra.mxu0 0
        %1273 = vmatprep.subr.bf16.mxu0 0
        %1274 = vmatpush1.bf16.msra.mxu0 0
        %1275 = vmatprep.subr.bf16.mxu0 0
        %1276 = vmatpush1.bf16.msra.mxu0 0
        %1277 = vmatprep.subr.bf16.mxu0 0
        %1278 = vmatpush1.bf16.msra.mxu0 0
        %1279 = vmatprep.subr.bf16.mxu0 0
        %1280 = vmatpush1.bf16.msra.mxu0 0
        %1281 = vmatprep.subr.bf16.mxu0 0
        %1282 = vmatpush1.bf16.msra.mxu0 %v1265
        %1283 = vmatprep.subr.bf16.mxu0 0
        %1284 = vmatpush2.bf16.msra.mxu0 0
        %1285 = vmatprep.subr.bf16.mxu0 0
        %1286 = vmatpush2.bf16.msra.mxu0 0
        %1287 = vmatprep.subr.bf16.mxu0 0
        %1288 = vmatpush2.bf16.msra.mxu0 0
        %1289 = vmatprep.subr.bf16.mxu0 0
        %1290 = vmatpush2.bf16.msra.mxu0 0
        %1291 = vmatprep.subr.bf16.mxu0 0
        %1292 = vmatpush2.bf16.msra.mxu0 0
        %1293 = vmatprep.subr.bf16.mxu0 0
        %1294 = vmatpush2.bf16.msra.mxu0 0
        %1295 = vmatprep.subr.bf16.mxu0 0
        %1296 = vmatpush2.bf16.msra.mxu0 0
        %1297 = vmatprep.subr.bf16.mxu0 0
        %1298 = vmatpush2.bf16.msra.mxu0 0
        %1299 = vmatprep.mubr.bf16.mxu0 0
        %1300 = vmatmul.mubr.bf16.gmra.mxu0 %v1262
        %v1301 = vpop.f32.mrf.mxu0
        %v1302 = vadd.f32 0.0, %v1301
        %v1303 = vpop.f32.mrf.mxu0
        %v1304 = vpop.f32.mrf.mxu0
        %v1305 = vpop.f32.mrf.mxu0
        %1306 = vdwg.mxu0
        %v1307 = vpack.c.bf16 %v1302, %v1302
        %v1310 = vunpack.c.l.b16 %v706
        %v1311 = vunpack.c.l.b16 %v707
        %v1312 = vpack.c.b16 %v1311, %v1310
        %v1315 = vsel %vm716, %v1307, 0
        %1317 = vmatprep.subr.bf16.mxu0 0
        %1318 = vmatpush1.bf16.msra.mxu0 0
        %1319 = vmatprep.subr.bf16.mxu0 0
        %1320 = vmatpush1.bf16.msra.mxu0 0
        %1321 = vmatprep.subr.bf16.mxu0 0
        %1322 = vmatpush1.bf16.msra.mxu0 0
        %1323 = vmatprep.subr.bf16.mxu0 0
        %1324 = vmatpush1.bf16.msra.mxu0 0
        %1325 = vmatprep.subr.bf16.mxu0 0
        %1326 = vmatpush1.bf16.msra.mxu0 0
        %1327 = vmatprep.subr.bf16.mxu0 0
        %1328 = vmatpush1.bf16.msra.mxu0 0
        %1329 = vmatprep.subr.bf16.mxu0 0
        %1330 = vmatpush1.bf16.msra.mxu0 0
        %1331 = vmatprep.subr.bf16.mxu0 0
        %1332 = vmatpush1.bf16.msra.mxu0 %v1312
        %1333 = vmatprep.subr.bf16.mxu0 0
        %1334 = vmatpush2.bf16.msra.mxu0 0
        %1335 = vmatprep.subr.bf16.mxu0 0
        %1336 = vmatpush2.bf16.msra.mxu0 0
        %1337 = vmatprep.subr.bf16.mxu0 0
        %1338 = vmatpush2.bf16.msra.mxu0 0
        %1339 = vmatprep.subr.bf16.mxu0 0
        %1340 = vmatpush2.bf16.msra.mxu0 0
        %1341 = vmatprep.subr.bf16.mxu0 0
        %1342 = vmatpush2.bf16.msra.mxu0 0
        %1343 = vmatprep.subr.bf16.mxu0 0
        %1344 = vmatpush2.bf16.msra.mxu0 0
        %1345 = vmatprep.subr.bf16.mxu0 0
        %1346 = vmatpush2.bf16.msra.mxu0 0
        %1347 = vmatprep.subr.bf16.mxu0 0
        %1348 = vmatpush2.bf16.msra.mxu0 0
        %1349 = vmatprep.mubr.bf16.mxu0 0
        %1350 = vmatmul.mubr.bf16.gmra.mxu0 %v1315
        %v1351 = vpop.f32.mrf.mxu0
        %v1352 = vadd.f32 0.0, %v1351
        %v1353 = vpop.f32.mrf.mxu0
        %v1354 = vpop.f32.mrf.mxu0
        %v1355 = vpop.f32.mrf.mxu0
        %1356 = vdwg.mxu0
        %v1357 = vadd.f32 %v1196, %v1352
        %1358 = vrot.lane.b32.xlu0 %v697, 64
        %v1359 = vpop.permute.xlu0 %1358
        %1360 = vrot.lane.b32.xlu0 %v698, 64
        %v1361 = vpop.permute.xlu0 %1360
        %v1363 = vsel %vm716, %v1359, 0
        %v1366 = vsel %vm716, %v1361, 0
        %1368 = vmatprep.subr.bf16.mxu0 0
        %1369 = vmatpush1.bf16.xpose.msra.mxu0 0
        %1370 = vmatprep.subr.bf16.mxu0 0
        %1371 = vmatpush1.bf16.xpose.msra.mxu0 0
        %1372 = vmatprep.subr.bf16.mxu0 0
        %1373 = vmatpush1.bf16.xpose.msra.mxu0 0
        %1374 = vmatprep.subr.bf16.mxu0 0
        %1375 = vmatpush1.bf16.xpose.msra.mxu0 0
        %1376 = vmatprep.subr.bf16.mxu0 0
        %1377 = vmatpush1.bf16.xpose.msra.mxu0 0
        %1378 = vmatprep.subr.bf16.mxu0 0
        %1379 = vmatpush1.bf16.xpose.msra.mxu0 0
        %1380 = vmatprep.subr.bf16.mxu0 0
        %1381 = vmatpush1.bf16.xpose.msra.mxu0 0
        %1382 = vmatprep.subr.bf16.mxu0 0
        %1383 = vmatpush1.bf16.xpose.msra.mxu0 %v1366
        %1384 = vmatprep.subr.bf16.mxu0 0
        %1385 = vmatpush2.bf16.xpose.msra.mxu0 0
        %1386 = vmatprep.subr.bf16.mxu0 0
        %1387 = vmatpush2.bf16.xpose.msra.mxu0 0
        %1388 = vmatprep.subr.bf16.mxu0 0
        %1389 = vmatpush2.bf16.xpose.msra.mxu0 0
        %1390 = vmatprep.subr.bf16.mxu0 0
        %1391 = vmatpush2.bf16.xpose.msra.mxu0 0
        %1392 = vmatprep.subr.bf16.mxu0 0
        %1393 = vmatpush2.bf16.xpose.msra.mxu0 0
        %1394 = vmatprep.subr.bf16.mxu0 0
        %1395 = vmatpush2.bf16.xpose.msra.mxu0 0
        %1396 = vmatprep.subr.bf16.mxu0 0
        %1397 = vmatpush2.bf16.xpose.msra.mxu0 0
        %1398 = vmatprep.subr.bf16.mxu0 0
        %1399 = vmatpush2.bf16.xpose.msra.mxu0 0
        %1400 = vmatprep.mubr.bf16.mxu0 0
        %1401 = vmatmul.mubr.bf16.gmra.mxu0 %v1363
        %v1402 = vpop.f32.mrf.mxu0
        %v1403 = vadd.f32 0.0, %v1402
        %v1404 = vpop.f32.mrf.mxu0
        %v1405 = vpop.f32.mrf.mxu0
        %v1406 = vpop.f32.mrf.mxu0
        %1407 = vdwg.mxu0
        %v1408 = vsel %vm763, %v1403, -inf
        %1409 = vmax.xlane.f32.xlu0 %v1408
        %v1410 = vpop.xlane.xlu0 %1409
        %v1411 = vsub.f32 %v1403, %v1410
        %v1412 = vmul.f32 %v1411, 1.442695
        %v1413 = vpow.pop %v1412
        %v1414 = vsel %vm763, %v1413, 0.0
        %1415 = vadd.xlane.f32.xlu0 %v1414
        %v1416 = vpop.xlane.xlu0 %1415
        %v1417 = vrcp.pop %v1416
        %v1418 = vmul.f32 %v1413, %v1417
        %v1419 = vpack.c.bf16 %v1418, %v1418
        %1420 = vrot.lane.b32.xlu0 %v699, 64
        %v1421 = vpop.permute.xlu0 %1420
        %v1423 = vsel %vm763, %v1419, 0
        %v1426 = vsel %vm779, %v1421, 0
        %1428 = vmatprep.subr.bf16.mxu0 0
        %1429 = vmatpush1.bf16.msra.mxu0 0
        %1430 = vmatprep.subr.bf16.mxu0 0
        %1431 = vmatpush1.bf16.msra.mxu0 0
        %1432 = vmatprep.subr.bf16.mxu0 0
        %1433 = vmatpush1.bf16.msra.mxu0 0
        %1434 = vmatprep.subr.bf16.mxu0 0
        %1435 = vmatpush1.bf16.msra.mxu0 0
        %1436 = vmatprep.subr.bf16.mxu0 0
        %1437 = vmatpush1.bf16.msra.mxu0 0
        %1438 = vmatprep.subr.bf16.mxu0 0
        %1439 = vmatpush1.bf16.msra.mxu0 0
        %1440 = vmatprep.subr.bf16.mxu0 0
        %1441 = vmatpush1.bf16.msra.mxu0 0
        %1442 = vmatprep.subr.bf16.mxu0 0
        %1443 = vmatpush1.bf16.msra.mxu0 %v1426
        %1444 = vmatprep.subr.bf16.mxu0 0
        %1445 = vmatpush2.bf16.msra.mxu0 0
        %1446 = vmatprep.subr.bf16.mxu0 0
        %1447 = vmatpush2.bf16.msra.mxu0 0
        %1448 = vmatprep.subr.bf16.mxu0 0
        %1449 = vmatpush2.bf16.msra.mxu0 0
        %1450 = vmatprep.subr.bf16.mxu0 0
        %1451 = vmatpush2.bf16.msra.mxu0 0
        %1452 = vmatprep.subr.bf16.mxu0 0
        %1453 = vmatpush2.bf16.msra.mxu0 0
        %1454 = vmatprep.subr.bf16.mxu0 0
        %1455 = vmatpush2.bf16.msra.mxu0 0
        %1456 = vmatprep.subr.bf16.mxu0 0
        %1457 = vmatpush2.bf16.msra.mxu0 0
        %1458 = vmatprep.subr.bf16.mxu0 0
        %1459 = vmatpush2.bf16.msra.mxu0 0
        %1460 = vmatprep.mubr.bf16.mxu0 0
        %1461 = vmatmul.mubr.bf16.gmra.mxu0 %v1423
        %v1462 = vpop.f32.mrf.mxu0
        %v1463 = vadd.f32 0.0, %v1462
        %v1464 = vpop.f32.mrf.mxu0
        %v1465 = vpop.f32.mrf.mxu0
        %v1466 = vpop.f32.mrf.mxu0
        %1467 = vdwg.mxu0
        %v1468 = vpack.c.bf16 %v1463, %v1463
        %v1471 = vunpack.c.l.b16 %v708
        %v1472 = vunpack.c.l.b16 %v709
        %v1473 = vpack.c.b16 %v1472, %v1471
        %v1476 = vsel %vm716, %v1468, 0
        %1478 = vmatprep.subr.bf16.mxu0 0
        %1479 = vmatpush1.bf16.msra.mxu0 0
        %1480 = vmatprep.subr.bf16.mxu0 0
        %1481 = vmatpush1.bf16.msra.mxu0 0
        %1482 = vmatprep.subr.bf16.mxu0 0
        %1483 = vmatpush1.bf16.msra.mxu0 0
        %1484 = vmatprep.subr.bf16.mxu0 0
        %1485 = vmatpush1.bf16.msra.mxu0 0
        %1486 = vmatprep.subr.bf16.mxu0 0
        %1487 = vmatpush1.bf16.msra.mxu0 0
        %1488 = vmatprep.subr.bf16.mxu0 0
        %1489 = vmatpush1.bf16.msra.mxu0 0
        %1490 = vmatprep.subr.bf16.mxu0 0
        %1491 = vmatpush1.bf16.msra.mxu0 0
        %1492 = vmatprep.subr.bf16.mxu0 0
        %1493 = vmatpush1.bf16.msra.mxu0 %v1473
        %1494 = vmatprep.subr.bf16.mxu0 0
        %1495 = vmatpush2.bf16.msra.mxu0 0
        %1496 = vmatprep.subr.bf16.mxu0 0
        %1497 = vmatpush2.bf16.msra.mxu0 0
        %1498 = vmatprep.subr.bf16.mxu0 0
        %1499 = vmatpush2.bf16.msra.mxu0 0
        %1500 = vmatprep.subr.bf16.mxu0 0
        %1501 = vmatpush2.bf16.msra.mxu0 0
        %1502 = vmatprep.subr.bf16.mxu0 0
        %1503 = vmatpush2.bf16.msra.mxu0 0
        %1504 = vmatprep.subr.bf16.mxu0 0
        %1505 = vmatpush2.bf16.msra.mxu0 0
        %1506 = vmatprep.subr.bf16.mxu0 0
        %1507 = vmatpush2.bf16.msra.mxu0 0
        %1508 = vmatprep.subr.bf16.mxu0 0
        %1509 = vmatpush2.bf16.msra.mxu0 0
        %1510 = vmatprep.mubr.bf16.mxu0 0
        %1511 = vmatmul.mubr.bf16.gmra.mxu0 %v1476
        %v1512 = vpop.f32.mrf.mxu0
        %v1513 = vadd.f32 0.0, %v1512
        %v1514 = vpop.f32.mrf.mxu0
        %v1515 = vpop.f32.mrf.mxu0
        %v1516 = vpop.f32.mrf.mxu0
        %1517 = vdwg.mxu0
        %v1518 = vadd.f32 %v1357, %v1513
        %1519 = vrot.lane.b32.xlu0 %v697, 48
        %v1520 = vpop.permute.xlu0 %1519
        %1521 = vrot.lane.b32.xlu0 %v698, 48
        %v1522 = vpop.permute.xlu0 %1521
        %v1524 = vsel %vm716, %v1520, 0
        %v1527 = vsel %vm716, %v1522, 0
        %1529 = vmatprep.subr.bf16.mxu0 0
        %1530 = vmatpush1.bf16.xpose.msra.mxu0 0
        %1531 = vmatprep.subr.bf16.mxu0 0
        %1532 = vmatpush1.bf16.xpose.msra.mxu0 0
        %1533 = vmatprep.subr.bf16.mxu0 0
        %1534 = vmatpush1.bf16.xpose.msra.mxu0 0
        %1535 = vmatprep.subr.bf16.mxu0 0
        %1536 = vmatpush1.bf16.xpose.msra.mxu0 0
        %1537 = vmatprep.subr.bf16.mxu0 0
        %1538 = vmatpush1.bf16.xpose.msra.mxu0 0
        %1539 = vmatprep.subr.bf16.mxu0 0
        %1540 = vmatpush1.bf16.xpose.msra.mxu0 0
        %1541 = vmatprep.subr.bf16.mxu0 0
        %1542 = vmatpush1.bf16.xpose.msra.mxu0 0
        %1543 = vmatprep.subr.bf16.mxu0 0
        %1544 = vmatpush1.bf16.xpose.msra.mxu0 %v1527
        %1545 = vmatprep.subr.bf16.mxu0 0
        %1546 = vmatpush2.bf16.xpose.msra.mxu0 0
        %1547 = vmatprep.subr.bf16.mxu0 0
        %1548 = vmatpush2.bf16.xpose.msra.mxu0 0
        %1549 = vmatprep.subr.bf16.mxu0 0
        %1550 = vmatpush2.bf16.xpose.msra.mxu0 0
        %1551 = vmatprep.subr.bf16.mxu0 0
        %1552 = vmatpush2.bf16.xpose.msra.mxu0 0
        %1553 = vmatprep.subr.bf16.mxu0 0
        %1554 = vmatpush2.bf16.xpose.msra.mxu0 0
        %1555 = vmatprep.subr.bf16.mxu0 0
        %1556 = vmatpush2.bf16.xpose.msra.mxu0 0
        %1557 = vmatprep.subr.bf16.mxu0 0
        %1558 = vmatpush2.bf16.xpose.msra.mxu0 0
        %1559 = vmatprep.subr.bf16.mxu0 0
        %1560 = vmatpush2.bf16.xpose.msra.mxu0 0
        %1561 = vmatprep.mubr.bf16.mxu0 0
        %1562 = vmatmul.mubr.bf16.gmra.mxu0 %v1524
        %v1563 = vpop.f32.mrf.mxu0
        %v1564 = vadd.f32 0.0, %v1563
        %v1565 = vpop.f32.mrf.mxu0
        %v1566 = vpop.f32.mrf.mxu0
        %v1567 = vpop.f32.mrf.mxu0
        %1568 = vdwg.mxu0
        %v1569 = vsel %vm763, %v1564, -inf
        %1570 = vmax.xlane.f32.xlu0 %v1569
        %v1571 = vpop.xlane.xlu0 %1570
        %v1572 = vsub.f32 %v1564, %v1571
        %v1573 = vmul.f32 %v1572, 1.442695
        %v1574 = vpow.pop %v1573
        %v1575 = vsel %vm763, %v1574, 0.0
        %1576 = vadd.xlane.f32.xlu0 %v1575
        %v1577 = vpop.xlane.xlu0 %1576
        %v1578 = vrcp.pop %v1577
        %v1579 = vmul.f32 %v1574, %v1578
        %v1580 = vpack.c.bf16 %v1579, %v1579
        %1581 = vrot.lane.b32.xlu0 %v699, 48
        %v1582 = vpop.permute.xlu0 %1581
        %v1584 = vsel %vm763, %v1580, 0
        %v1587 = vsel %vm779, %v1582, 0
        %1589 = vmatprep.subr.bf16.mxu0 0
        %1590 = vmatpush1.bf16.msra.mxu0 0
        %1591 = vmatprep.subr.bf16.mxu0 0
        %1592 = vmatpush1.bf16.msra.mxu0 0
        %1593 = vmatprep.subr.bf16.mxu0 0
        %1594 = vmatpush1.bf16.msra.mxu0 0
        %1595 = vmatprep.subr.bf16.mxu0 0
        %1596 = vmatpush1.bf16.msra.mxu0 0
        %1597 = vmatprep.subr.bf16.mxu0 0
        %1598 = vmatpush1.bf16.msra.mxu0 0
        %1599 = vmatprep.subr.bf16.mxu0 0
        %1600 = vmatpush1.bf16.msra.mxu0 0
        %1601 = vmatprep.subr.bf16.mxu0 0
        %1602 = vmatpush1.bf16.msra.mxu0 0
        %1603 = vmatprep.subr.bf16.mxu0 0
        %1604 = vmatpush1.bf16.msra.mxu0 %v1587
        %1605 = vmatprep.subr.bf16.mxu0 0
        %1606 = vmatpush2.bf16.msra.mxu0 0
        %1607 = vmatprep.subr.bf16.mxu0 0
        %1608 = vmatpush2.bf16.msra.mxu0 0
        %1609 = vmatprep.subr.bf16.mxu0 0
        %1610 = vmatpush2.bf16.msra.mxu0 0
        %1611 = vmatprep.subr.bf16.mxu0 0
        %1612 = vmatpush2.bf16.msra.mxu0 0
        %1613 = vmatprep.subr.bf16.mxu0 0
        %1614 = vmatpush2.bf16.msra.mxu0 0
        %1615 = vmatprep.subr.bf16.mxu0 0
        %1616 = vmatpush2.bf16.msra.mxu0 0
        %1617 = vmatprep.subr.bf16.mxu0 0
        %1618 = vmatpush2.bf16.msra.mxu0 0
        %1619 = vmatprep.subr.bf16.mxu0 0
        %1620 = vmatpush2.bf16.msra.mxu0 0
        %1621 = vmatprep.mubr.bf16.mxu0 0
        %1622 = vmatmul.mubr.bf16.gmra.mxu0 %v1584
        %v1623 = vpop.f32.mrf.mxu0
        %v1624 = vadd.f32 0.0, %v1623
        %v1625 = vpop.f32.mrf.mxu0
        %v1626 = vpop.f32.mrf.mxu0
        %v1627 = vpop.f32.mrf.mxu0
        %1628 = vdwg.mxu0
        %v1629 = vpack.c.bf16 %v1624, %v1624
        %v1632 = vunpack.c.l.b16 %v710
        %v1633 = vunpack.c.l.b16 %v711
        %v1634 = vpack.c.b16 %v1633, %v1632
        %v1637 = vsel %vm716, %v1629, 0
        %1639 = vmatprep.subr.bf16.mxu0 0
        %1640 = vmatpush1.bf16.msra.mxu0 0
        %1641 = vmatprep.subr.bf16.mxu0 0
        %1642 = vmatpush1.bf16.msra.mxu0 0
        %1643 = vmatprep.subr.bf16.mxu0 0
        %1644 = vmatpush1.bf16.msra.mxu0 0
        %1645 = vmatprep.subr.bf16.mxu0 0
        %1646 = vmatpush1.bf16.msra.mxu0 0
        %1647 = vmatprep.subr.bf16.mxu0 0
        %1648 = vmatpush1.bf16.msra.mxu0 0
        %1649 = vmatprep.subr.bf16.mxu0 0
        %1650 = vmatpush1.bf16.msra.mxu0 0
        %1651 = vmatprep.subr.bf16.mxu0 0
        %1652 = vmatpush1.bf16.msra.mxu0 0
        %1653 = vmatprep.subr.bf16.mxu0 0
        %1654 = vmatpush1.bf16.msra.mxu0 %v1634
        %1655 = vmatprep.subr.bf16.mxu0 0
        %1656 = vmatpush2.bf16.msra.mxu0 0
        %1657 = vmatprep.subr.bf16.mxu0 0
        %1658 = vmatpush2.bf16.msra.mxu0 0
        %1659 = vmatprep.subr.bf16.mxu0 0
        %1660 = vmatpush2.bf16.msra.mxu0 0
        %1661 = vmatprep.subr.bf16.mxu0 0
        %1662 = vmatpush2.bf16.msra.mxu0 0
        %1663 = vmatprep.subr.bf16.mxu0 0
        %1664 = vmatpush2.bf16.msra.mxu0 0
        %1665 = vmatprep.subr.bf16.mxu0 0
        %1666 = vmatpush2.bf16.msra.mxu0 0
        %1667 = vmatprep.subr.bf16.mxu0 0
        %1668 = vmatpush2.bf16.msra.mxu0 0
        %1669 = vmatprep.subr.bf16.mxu0 0
        %1670 = vmatpush2.bf16.msra.mxu0 0
        %1671 = vmatprep.mubr.bf16.mxu0 0
        %1672 = vmatmul.mubr.bf16.gmra.mxu0 %v1637
        %v1673 = vpop.f32.mrf.mxu0
        %v1674 = vadd.f32 0.0, %v1673
        %v1675 = vpop.f32.mrf.mxu0
        %v1676 = vpop.f32.mrf.mxu0
        %v1677 = vpop.f32.mrf.mxu0
        %1678 = vdwg.mxu0
        %v1679 = vadd.f32 %v1518, %v1674
        %1680 = vrot.lane.b32.xlu0 %v697, 32
        %v1681 = vpop.permute.xlu0 %1680
        %1682 = vrot.lane.b32.xlu0 %v698, 32
        %v1683 = vpop.permute.xlu0 %1682
        %v1685 = vsel %vm716, %v1681, 0
        %v1688 = vsel %vm716, %v1683, 0
        %1690 = vmatprep.subr.bf16.mxu0 0
        %1691 = vmatpush1.bf16.xpose.msra.mxu0 0
        %1692 = vmatprep.subr.bf16.mxu0 0
        %1693 = vmatpush1.bf16.xpose.msra.mxu0 0
        %1694 = vmatprep.subr.bf16.mxu0 0
        %1695 = vmatpush1.bf16.xpose.msra.mxu0 0
        %1696 = vmatprep.subr.bf16.mxu0 0
        %1697 = vmatpush1.bf16.xpose.msra.mxu0 0
        %1698 = vmatprep.subr.bf16.mxu0 0
        %1699 = vmatpush1.bf16.xpose.msra.mxu0 0
        %1700 = vmatprep.subr.bf16.mxu0 0
        %1701 = vmatpush1.bf16.xpose.msra.mxu0 0
        %1702 = vmatprep.subr.bf16.mxu0 0
        %1703 = vmatpush1.bf16.xpose.msra.mxu0 0
        %1704 = vmatprep.subr.bf16.mxu0 0
        %1705 = vmatpush1.bf16.xpose.msra.mxu0 %v1688
        %1706 = vmatprep.subr.bf16.mxu0 0
        %1707 = vmatpush2.bf16.xpose.msra.mxu0 0
        %1708 = vmatprep.subr.bf16.mxu0 0
        %1709 = vmatpush2.bf16.xpose.msra.mxu0 0
        %1710 = vmatprep.subr.bf16.mxu0 0
        %1711 = vmatpush2.bf16.xpose.msra.mxu0 0
        %1712 = vmatprep.subr.bf16.mxu0 0
        %1713 = vmatpush2.bf16.xpose.msra.mxu0 0
        %1714 = vmatprep.subr.bf16.mxu0 0
        %1715 = vmatpush2.bf16.xpose.msra.mxu0 0
        %1716 = vmatprep.subr.bf16.mxu0 0
        %1717 = vmatpush2.bf16.xpose.msra.mxu0 0
        %1718 = vmatprep.subr.bf16.mxu0 0
        %1719 = vmatpush2.bf16.xpose.msra.mxu0 0
        %1720 = vmatprep.subr.bf16.mxu0 0
        %1721 = vmatpush2.bf16.xpose.msra.mxu0 0
        %1722 = vmatprep.mubr.bf16.mxu0 0
        %1723 = vmatmul.mubr.bf16.gmra.mxu0 %v1685
        %v1724 = vpop.f32.mrf.mxu0
        %v1725 = vadd.f32 0.0, %v1724
        %v1726 = vpop.f32.mrf.mxu0
        %v1727 = vpop.f32.mrf.mxu0
        %v1728 = vpop.f32.mrf.mxu0
        %1729 = vdwg.mxu0
        %v1730 = vsel %vm763, %v1725, -inf
        %1731 = vmax.xlane.f32.xlu0 %v1730
        %v1732 = vpop.xlane.xlu0 %1731
        %v1733 = vsub.f32 %v1725, %v1732
        %v1734 = vmul.f32 %v1733, 1.442695
        %v1735 = vpow.pop %v1734
        %v1736 = vsel %vm763, %v1735, 0.0
        %1737 = vadd.xlane.f32.xlu0 %v1736
        %v1738 = vpop.xlane.xlu0 %1737
        %v1739 = vrcp.pop %v1738
        %v1740 = vmul.f32 %v1735, %v1739
        %v1741 = vpack.c.bf16 %v1740, %v1740
        %1742 = vrot.lane.b32.xlu0 %v699, 32
        %v1743 = vpop.permute.xlu0 %1742
        %v1745 = vsel %vm763, %v1741, 0
        %v1748 = vsel %vm779, %v1743, 0
        %1750 = vmatprep.subr.bf16.mxu0 0
        %1751 = vmatpush1.bf16.msra.mxu0 0
        %1752 = vmatprep.subr.bf16.mxu0 0
        %1753 = vmatpush1.bf16.msra.mxu0 0
        %1754 = vmatprep.subr.bf16.mxu0 0
        %1755 = vmatpush1.bf16.msra.mxu0 0
        %1756 = vmatprep.subr.bf16.mxu0 0
        %1757 = vmatpush1.bf16.msra.mxu0 0
        %1758 = vmatprep.subr.bf16.mxu0 0
        %1759 = vmatpush1.bf16.msra.mxu0 0
        %1760 = vmatprep.subr.bf16.mxu0 0
        %1761 = vmatpush1.bf16.msra.mxu0 0
        %1762 = vmatprep.subr.bf16.mxu0 0
        %1763 = vmatpush1.bf16.msra.mxu0 0
        %1764 = vmatprep.subr.bf16.mxu0 0
        %1765 = vmatpush1.bf16.msra.mxu0 %v1748
        %1766 = vmatprep.subr.bf16.mxu0 0
        %1767 = vmatpush2.bf16.msra.mxu0 0
        %1768 = vmatprep.subr.bf16.mxu0 0
        %1769 = vmatpush2.bf16.msra.mxu0 0
        %1770 = vmatprep.subr.bf16.mxu0 0
        %1771 = vmatpush2.bf16.msra.mxu0 0
        %1772 = vmatprep.subr.bf16.mxu0 0
        %1773 = vmatpush2.bf16.msra.mxu0 0
        %1774 = vmatprep.subr.bf16.mxu0 0
        %1775 = vmatpush2.bf16.msra.mxu0 0
        %1776 = vmatprep.subr.bf16.mxu0 0
        %1777 = vmatpush2.bf16.msra.mxu0 0
        %1778 = vmatprep.subr.bf16.mxu0 0
        %1779 = vmatpush2.bf16.msra.mxu0 0
        %1780 = vmatprep.subr.bf16.mxu0 0
        %1781 = vmatpush2.bf16.msra.mxu0 0
        %1782 = vmatprep.mubr.bf16.mxu0 0
        %1783 = vmatmul.mubr.bf16.gmra.mxu0 %v1745
        %v1784 = vpop.f32.mrf.mxu0
        %v1785 = vadd.f32 0.0, %v1784
        %v1786 = vpop.f32.mrf.mxu0
        %v1787 = vpop.f32.mrf.mxu0
        %v1788 = vpop.f32.mrf.mxu0
        %1789 = vdwg.mxu0
        %v1790 = vpack.c.bf16 %v1785, %v1785
        %v1793 = vunpack.c.l.b16 %v712
        %v1794 = vunpack.c.l.b16 %v713
        %v1795 = vpack.c.b16 %v1794, %v1793
        %v1798 = vsel %vm716, %v1790, 0
        %1800 = vmatprep.subr.bf16.mxu0 0
        %1801 = vmatpush1.bf16.msra.mxu0 0
        %1802 = vmatprep.subr.bf16.mxu0 0
        %1803 = vmatpush1.bf16.msra.mxu0 0
        %1804 = vmatprep.subr.bf16.mxu0 0
        %1805 = vmatpush1.bf16.msra.mxu0 0
        %1806 = vmatprep.subr.bf16.mxu0 0
        %1807 = vmatpush1.bf16.msra.mxu0 0
        %1808 = vmatprep.subr.bf16.mxu0 0
        %1809 = vmatpush1.bf16.msra.mxu0 0
        %1810 = vmatprep.subr.bf16.mxu0 0
        %1811 = vmatpush1.bf16.msra.mxu0 0
        %1812 = vmatprep.subr.bf16.mxu0 0
        %1813 = vmatpush1.bf16.msra.mxu0 0
        %1814 = vmatprep.subr.bf16.mxu0 0
        %1815 = vmatpush1.bf16.msra.mxu0 %v1795
        %1816 = vmatprep.subr.bf16.mxu0 0
        %1817 = vmatpush2.bf16.msra.mxu0 0
        %1818 = vmatprep.subr.bf16.mxu0 0
        %1819 = vmatpush2.bf16.msra.mxu0 0
        %1820 = vmatprep.subr.bf16.mxu0 0
        %1821 = vmatpush2.bf16.msra.mxu0 0
        %1822 = vmatprep.subr.bf16.mxu0 0
        %1823 = vmatpush2.bf16.msra.mxu0 0
        %1824 = vmatprep.subr.bf16.mxu0 0
        %1825 = vmatpush2.bf16.msra.mxu0 0
        %1826 = vmatprep.subr.bf16.mxu0 0
        %1827 = vmatpush2.bf16.msra.mxu0 0
        %1828 = vmatprep.subr.bf16.mxu0 0
        %1829 = vmatpush2.bf16.msra.mxu0 0
        %1830 = vmatprep.subr.bf16.mxu0 0
        %1831 = vmatpush2.bf16.msra.mxu0 0
        %1832 = vmatprep.mubr.bf16.mxu0 0
        %1833 = vmatmul.mubr.bf16.gmra.mxu0 %v1798
        %v1834 = vpop.f32.mrf.mxu0
        %v1835 = vadd.f32 0.0, %v1834
        %v1836 = vpop.f32.mrf.mxu0
        %v1837 = vpop.f32.mrf.mxu0
        %v1838 = vpop.f32.mrf.mxu0
        %1839 = vdwg.mxu0
        %v1840 = vadd.f32 %v1679, %v1835
        %1841 = vrot.lane.b32.xlu0 %v697, 16
        %v1842 = vpop.permute.xlu0 %1841
        %1843 = vrot.lane.b32.xlu0 %v698, 16
        %v1844 = vpop.permute.xlu0 %1843
        %v1846 = vsel %vm716, %v1842, 0
        %v1849 = vsel %vm716, %v1844, 0
        %1851 = vmatprep.subr.bf16.mxu0 0
        %1852 = vmatpush1.bf16.xpose.msra.mxu0 0
        %1853 = vmatprep.subr.bf16.mxu0 0
        %1854 = vmatpush1.bf16.xpose.msra.mxu0 0
        %1855 = vmatprep.subr.bf16.mxu0 0
        %1856 = vmatpush1.bf16.xpose.msra.mxu0 0
        %1857 = vmatprep.subr.bf16.mxu0 0
        %1858 = vmatpush1.bf16.xpose.msra.mxu0 0
        %1859 = vmatprep.subr.bf16.mxu0 0
        %1860 = vmatpush1.bf16.xpose.msra.mxu0 0
        %1861 = vmatprep.subr.bf16.mxu0 0
        %1862 = vmatpush1.bf16.xpose.msra.mxu0 0
        %1863 = vmatprep.subr.bf16.mxu0 0
        %1864 = vmatpush1.bf16.xpose.msra.mxu0 0
        %1865 = vmatprep.subr.bf16.mxu0 0
        %1866 = vmatpush1.bf16.xpose.msra.mxu0 %v1849
        %1867 = vmatprep.subr.bf16.mxu0 0
        %1868 = vmatpush2.bf16.xpose.msra.mxu0 0
        %1869 = vmatprep.subr.bf16.mxu0 0
        %1870 = vmatpush2.bf16.xpose.msra.mxu0 0
        %1871 = vmatprep.subr.bf16.mxu0 0
        %1872 = vmatpush2.bf16.xpose.msra.mxu0 0
        %1873 = vmatprep.subr.bf16.mxu0 0
        %1874 = vmatpush2.bf16.xpose.msra.mxu0 0
        %1875 = vmatprep.subr.bf16.mxu0 0
        %1876 = vmatpush2.bf16.xpose.msra.mxu0 0
        %1877 = vmatprep.subr.bf16.mxu0 0
        %1878 = vmatpush2.bf16.xpose.msra.mxu0 0
        %1879 = vmatprep.subr.bf16.mxu0 0
        %1880 = vmatpush2.bf16.xpose.msra.mxu0 0
        %1881 = vmatprep.subr.bf16.mxu0 0
        %1882 = vmatpush2.bf16.xpose.msra.mxu0 0
        %1883 = vmatprep.mubr.bf16.mxu0 0
        %1884 = vmatmul.mubr.bf16.gmra.mxu0 %v1846
        %v1885 = vpop.f32.mrf.mxu0
        %v1886 = vadd.f32 0.0, %v1885
        %v1887 = vpop.f32.mrf.mxu0
        %v1888 = vpop.f32.mrf.mxu0
        %v1889 = vpop.f32.mrf.mxu0
        %1890 = vdwg.mxu0
        %v1891 = vsel %vm763, %v1886, -inf
        %1892 = vmax.xlane.f32.xlu0 %v1891
        %v1893 = vpop.xlane.xlu0 %1892
        %v1894 = vsub.f32 %v1886, %v1893
        %v1895 = vmul.f32 %v1894, 1.442695
        %v1896 = vpow.pop %v1895
        %v1897 = vsel %vm763, %v1896, 0.0
        %1898 = vadd.xlane.f32.xlu0 %v1897
        %v1899 = vpop.xlane.xlu0 %1898
        %v1900 = vrcp.pop %v1899
        %v1901 = vmul.f32 %v1896, %v1900
        %v1902 = vpack.c.bf16 %v1901, %v1901
        %1903 = vrot.lane.b32.xlu0 %v699, 16
        %v1904 = vpop.permute.xlu0 %1903
        %v1906 = vsel %vm763, %v1902, 0
        %v1909 = vsel %vm779, %v1904, 0
        %1911 = vmatprep.subr.bf16.mxu0 0
        %1912 = vmatpush1.bf16.msra.mxu0 0
        %1913 = vmatprep.subr.bf16.mxu0 0
        %1914 = vmatpush1.bf16.msra.mxu0 0
        %1915 = vmatprep.subr.bf16.mxu0 0
        %1916 = vmatpush1.bf16.msra.mxu0 0
        %1917 = vmatprep.subr.bf16.mxu0 0
        %1918 = vmatpush1.bf16.msra.mxu0 0
        %1919 = vmatprep.subr.bf16.mxu0 0
        %1920 = vmatpush1.bf16.msra.mxu0 0
        %1921 = vmatprep.subr.bf16.mxu0 0
        %1922 = vmatpush1.bf16.msra.mxu0 0
        %1923 = vmatprep.subr.bf16.mxu0 0
        %1924 = vmatpush1.bf16.msra.mxu0 0
        %1925 = vmatprep.subr.bf16.mxu0 0
        %1926 = vmatpush1.bf16.msra.mxu0 %v1909
        %1927 = vmatprep.subr.bf16.mxu0 0
        %1928 = vmatpush2.bf16.msra.mxu0 0
        %1929 = vmatprep.subr.bf16.mxu0 0
        %1930 = vmatpush2.bf16.msra.mxu0 0
        %1931 = vmatprep.subr.bf16.mxu0 0
        %1932 = vmatpush2.bf16.msra.mxu0 0
        %1933 = vmatprep.subr.bf16.mxu0 0
        %1934 = vmatpush2.bf16.msra.mxu0 0
        %1935 = vmatprep.subr.bf16.mxu0 0
        %1936 = vmatpush2.bf16.msra.mxu0 0
        %1937 = vmatprep.subr.bf16.mxu0 0
        %1938 = vmatpush2.bf16.msra.mxu0 0
        %1939 = vmatprep.subr.bf16.mxu0 0
        %1940 = vmatpush2.bf16.msra.mxu0 0
        %1941 = vmatprep.subr.bf16.mxu0 0
        %1942 = vmatpush2.bf16.msra.mxu0 0
        %1943 = vmatprep.mubr.bf16.mxu0 0
        %1944 = vmatmul.mubr.bf16.gmra.mxu0 %v1906
        %v1945 = vpop.f32.mrf.mxu0
        %v1946 = vadd.f32 0.0, %v1945
        %v1947 = vpop.f32.mrf.mxu0
        %v1948 = vpop.f32.mrf.mxu0
        %v1949 = vpop.f32.mrf.mxu0
        %1950 = vdwg.mxu0
        %v1951 = vpack.c.bf16 %v1946, %v1946
        %v1954 = vunpack.c.l.b16 %v714
        %v1955 = vunpack.c.l.b16 %v715
        %v1956 = vpack.c.b16 %v1955, %v1954
        %v1959 = vsel %vm716, %v1951, 0
        %1961 = vmatprep.subr.bf16.mxu0 0
        %1962 = vmatpush1.bf16.msra.mxu0 0
        %1963 = vmatprep.subr.bf16.mxu0 0
        %1964 = vmatpush1.bf16.msra.mxu0 0
        %1965 = vmatprep.subr.bf16.mxu0 0
        %1966 = vmatpush1.bf16.msra.mxu0 0
        %1967 = vmatprep.subr.bf16.mxu0 0
        %1968 = vmatpush1.bf16.msra.mxu0 0
        %1969 = vmatprep.subr.bf16.mxu0 0
        %1970 = vmatpush1.bf16.msra.mxu0 0
        %1971 = vmatprep.subr.bf16.mxu0 0
        %1972 = vmatpush1.bf16.msra.mxu0 0
        %1973 = vmatprep.subr.bf16.mxu0 0
        %1974 = vmatpush1.bf16.msra.mxu0 0
        %1975 = vmatprep.subr.bf16.mxu0 0
        %1976 = vmatpush1.bf16.msra.mxu0 %v1956
        %1977 = vmatprep.subr.bf16.mxu0 0
        %1978 = vmatpush2.bf16.msra.mxu0 0
        %1979 = vmatprep.subr.bf16.mxu0 0
        %1980 = vmatpush2.bf16.msra.mxu0 0
        %1981 = vmatprep.subr.bf16.mxu0 0
        %1982 = vmatpush2.bf16.msra.mxu0 0
        %1983 = vmatprep.subr.bf16.mxu0 0
        %1984 = vmatpush2.bf16.msra.mxu0 0
        %1985 = vmatprep.subr.bf16.mxu0 0
        %1986 = vmatpush2.bf16.msra.mxu0 0
        %1987 = vmatprep.subr.bf16.mxu0 0
        %1988 = vmatpush2.bf16.msra.mxu0 0
        %1989 = vmatprep.subr.bf16.mxu0 0
        %1990 = vmatpush2.bf16.msra.mxu0 0
        %1991 = vmatprep.subr.bf16.mxu0 0
        %1992 = vmatpush2.bf16.msra.mxu0 0
        %1993 = vmatprep.mubr.bf16.mxu0 0
        %1994 = vmatmul.mubr.bf16.gmra.mxu0 %v1959
        %v1995 = vpop.f32.mrf.mxu0
        %v1996 = vadd.f32 0.0, %v1995
        %v1997 = vpop.f32.mrf.mxu0
        %v1998 = vpop.f32.mrf.mxu0
        %v1999 = vpop.f32.mrf.mxu0
        %2000 = vdwg.mxu0
        %v2001 = vadd.f32 %v1840, %v1996
        %v2002 = vadd.f32 %v425, %v2001
        %v2003 = vld [vmem:[%s417] sm:$0x1]
        %v2005 = vlaneseq
        %v2006 = vshrl.u32 %v2005, 7
        %v2007 = vsub.s32 0, %v2006
        %v2008 = vrot.slane %v2003, %v2007
        %v2010 = vadd.f32 %v2002, %v2008
        %2011 = vst [vmem:[%s411] sm:$0xff] %v2010
        %s2012 = sand.u32 %s205, 1
        %s2013 = scalar_lea.sflag [#allocation4], %s2012
        %s2014 = sand.u32 %s205, 1
        %s2015 = smul.addr %s2014, 8
        %s2016 = scalar_lea.vmem [#allocation10], %s2015
        // Predicated region
        $region65: #{tpu_custom_call.1} parent=43 // pred_check
          %p2017 = pneg %p215
        $region66: #{tpu_custom_call.1} parent=43 // pred_check_branch
          %2019 = sbr.rel (%p2017) target = $region68
        $region67: #{tpu_custom_call.1} parent=43 // pred_region
          %s2021 = ssub.s32 128, 128
          %2022 = vsyncadd %s2013, %s2021
          %s2023 = smul.addr %s33, 128
          %s2024 = scalar_lea.hbm %s6, %s2023
          %s2026 = sshll.u32 %s2016, 4
          %s2027 = int_to_ptr.vmem [resolvable:$true] %s2026
          %2029 = dma.vmem_to_hbm [thread:$0]  %s2027, 128, %s2024, %s2013
        $region68: #{tpu_custom_call.1} parent=43 // pred_fallthru
          _
      $region44: #{tpu_custom_call.1} parent=5 // pred_fallthru
        _
      %p2030 = scmp.le.s32.totalorder 2, %s24
      // Predicated region
      $region69: #{tpu_custom_call.1} parent=5 // pred_check
        %p2031 = pneg %p2030
      $region70: #{tpu_custom_call.1} parent=5 // pred_check_branch
        %2033 = sbr.rel (%p2031) target = $region72
      $region71: #{tpu_custom_call.1} parent=5 // pred_region
        %s2034 = ssub.s32 %s24, 2
        // Predicated region
        $region73: #{tpu_custom_call.1} parent=71 // pred_check
          %p2035 = pneg %p221
        $region74: #{tpu_custom_call.1} parent=71 // pred_check_branch
          %2037 = sbr.rel (%p2035) target = $region76
        $region75: #{tpu_custom_call.1} parent=71 // pred_region
          %s2038 = sand.u32 %s206, 1
          %s2039 = scalar_lea.sflag [#allocation4], %s2038
          %s2040 = sand.u32 %s206, 1
          %s2041 = smul.addr %s2040, 8
          %s2042 = scalar_lea.vmem [#allocation10], %s2041
          %2043 = dma.done %s2039, 128
        $region76: #{tpu_custom_call.1} parent=71 // pred_fallthru
          _
      $region72: #{tpu_custom_call.1} parent=5 // pred_fallthru
        _
    $region6: #{tpu_custom_call.1} parent=1 // loop_footer
      %s28 = sadd.s32 1, %s24
    $region7: #{tpu_custom_call.1} parent=1 // loop_footer_branch
      %23 = sbr.rel target = $region3
    $region8: #{tpu_custom_call.1} parent=1 // loop_exit
      _
    %2044 = vsyncpa [#allocation3], 1
    %s2045 = scalar_lea.sflag [#allocation3], 1
    %2046 = vsyncpa %s2045, 1
    %2047 = vsyncpa [#allocation6], 1
    %s2048 = scalar_lea.sflag [#allocation6], 1
    %2049 = vsyncpa %s2048, 1
    %2050 = vsyncpa [#allocation9], 1
    %s2051 = scalar_lea.sflag [#allocation9], 1
    %2052 = vsyncpa %s2051, 1
    %2053 = vsyncpa [#allocation4], 1
    %s2054 = scalar_lea.sflag [#allocation4], 1
    %2055 = vsyncpa %s2054, 1

</llo_original>
